<compile_context>
chip_gen: v6e
topology: v6e:2x2x1
jax: 0.10.0
libtpu: 0.0.40
codegen_flags: <defaults>
</compile_context>

<pallas_src>
import functools
import math

import jax
import jax.numpy as jnp
from jax import lax
from jax.experimental import pallas as pl
from jax.experimental.pallas import tpu as pltpu


# ---------------------------------------------------------------------------
# Pallas kernel: one (stream, batch-block) tile of fused QKV + MHA + out-proj
# ---------------------------------------------------------------------------
def _split_mha_kernel(x_ref, wqkv_ref, bqkv_ref, wo_ref, bo_ref, o_ref, *,
                      num_heads, head_dim_padded):
    # x_ref    : (1, Bt, S, Dp)  bf16 activations (feature axis pre-padded to Dp)
    # wqkv_ref : (1, Dp, 3*Dp)   bf16 fused, pre-transposed, Q-pre-scaled QKV weight
    # bqkv_ref : (1, 1, 3*Dp)    f32  fused QKV bias
    # wo_ref   : (1, Dp, Dp)     bf16 pre-transposed output projection weight
    # bo_ref   : (1, 1, Dp)      f32  output projection bias
    # o_ref    : (1, Bt, S, Dp)  f32  output
    H = num_heads
    hdp = head_dim_padded
    _, Bt, S, Dp = x_ref.shape

    x = x_ref[0].reshape(Bt * S, Dp)                                      # bf16 [Bt*S, Dp]

    # Fused QKV projection: bf16 x bf16 -> f32 accumulate on the MXU, f32 bias add.
    qkv = jnp.dot(x, wqkv_ref[0], preferred_element_type=jnp.float32)
    qkv = qkv + bqkv_ref[0]                                               # f32 [Bt*S, 3*Dp]

    def heads(a):
        # [Bt*S, Dp] -> head-major [Bt*H, S, hdp]: one explicit relayout per tensor so the
        # attention dot_generals below use a single LEADING batch dim (no hidden operand
        # transposes inside both matmuls).  Leading-dim reshapes are free.
        a = a.reshape(Bt, S, H, hdp).astype(jnp.bfloat16)
        a = jnp.swapaxes(a, 1, 2)                                         # [Bt, H, S, hdp]
        return a.reshape(Bt * H, S, hdp)

    q = heads(qkv[:, :Dp])            # 1/sqrt(head_dim) already folded into Wq / bq at init
    k = heads(qkv[:, Dp:2 * Dp])
    v = heads(qkv[:, 2 * Dp:])

    # Scores [Bt*H, S, S]; padded head-dim columns of q/k are zero -> no effect on scores.
    s = lax.dot_general(q, k, (((2,), (2,)), ((0,), (0,))),
                        preferred_element_type=jnp.float32)

    # Numerically stable softmax over the key axis; stats kept in f32.
    s = s - jnp.max(s, axis=-1, keepdims=True)
    p = jnp.exp(s)
    denom = jnp.sum(p, axis=-1, keepdims=True)
    p = (p * pl.reciprocal(denom, approx=True)).astype(jnp.bfloat16)      # EUP reciprocal

    # Context [Bt*H, S, hdp]; merge heads back to [Bt*S, Dp].
    ctx = lax.dot_general(p, v, (((2,), (1,)), ((0,), (0,))),
                          preferred_element_type=jnp.float32)
    ctx = ctx.reshape(Bt, H, S, hdp)
    ctx = jnp.swapaxes(ctx, 1, 2).reshape(Bt * S, Dp).astype(jnp.bfloat16)

    out = jnp.dot(ctx, wo_ref[0], preferred_element_type=jnp.float32) + bo_ref[0]
    o_ref[0] = out.reshape(Bt, S, Dp).astype(o_ref.dtype)


def _pick_batch_block(B, S, Dp, num_heads, budget_bytes=8 * 1024 * 1024):
    """Largest divisor of B whose per-step in-kernel working set stays within ~budget."""
    per_b = (S * Dp * (2 + 4)              # x bf16 in + out f32
             + 3 * S * Dp * 4              # qkv f32
             + 3 * S * Dp * 2              # head-major q/k/v bf16
             + 2 * num_heads * S * S * 4   # scores + probs f32
             + S * Dp * 4)                 # ctx f32
    bt = max(1, min(B, budget_bytes // max(per_b, 1)))
    while B % bt:
        bt -= 1
    return int(bt)


def split_mha_pallas(x_stacked, params_stacked, num_heads, head_dim_padded):
    """x_stacked: [G, B, S, Dp] bf16 (G=2 streams: position, velocity) -> [G, B, S, Dp] f32."""
    G, B, S, Dp = x_stacked.shape
    w_qkv_t, b_qkv, w_o_t, b_o = params_stacked
    Bt = _pick_batch_block(B, S, Dp, num_heads)

    kernel = functools.partial(_split_mha_kernel, num_heads=num_heads,
                               head_dim_padded=head_dim_padded)

    io_spec = pl.BlockSpec((1, Bt, S, Dp), lambda g, b: (g, b, 0, 0))
    # Weight index maps are constant along the inner batch axis (resident per stream).
    # TODO(synk): for large D (>=512) single-buffer the weight specs (pl.Buffered(1)) or DMA
    # them once into persistent VMEM scratch to reclaim the double-buffered footprint on v7x.
    wqkv_spec = pl.BlockSpec((1, Dp, 3 * Dp), lambda g, b: (g, 0, 0))
    bqkv_spec = pl.BlockSpec((1, 1, 3 * Dp), lambda g, b: (g, 0, 0))
    wo_spec = pl.BlockSpec((1, Dp, Dp), lambda g, b: (g, 0, 0))
    bo_spec = pl.BlockSpec((1, 1, Dp), lambda g, b: (g, 0, 0))

    # Advisory cost estimate for the bf16 / padded-D kernel (MACs counted as 2 flops).
    flops = int(G * B * (8 * S * Dp * Dp + 4 * S * S * Dp))
    transcendentals = int(G * B * num_heads * S * S)
    bytes_accessed = int(G * B * S * Dp * (2 + 4)              # x bf16 in, out f32
                         + G * (3 * Dp * Dp + Dp * Dp) * 2     # bf16 weights
                         + G * (3 * Dp + Dp) * 4)              # f32 biases

    # TODO(synk): for production S (thousands) add flash-style KV tiling (online softmax over
    # K/V blocks on an innermost "arbitrary" grid axis) so the [Bt*H,S,S] score tensor never
    # materializes - mandatory on v7x (64 MiB VMEM).  At moderate S the explicit limit below
    # plus the Bt heuristic keeps the working set resident on all generations.
    return pl.pallas_call(
        kernel,
        out_shape=jax.ShapeDtypeStruct((G, B, S, Dp), jnp.float32),
        grid=(G, B // Bt),
        in_specs=[io_spec, wqkv_spec, bqkv_spec, wo_spec, bo_spec],
        out_specs=io_spec,
        compiler_params=pltpu.CompilerParams(
            dimension_semantics=("parallel", "parallel"),
            vmem_limit_bytes=64 * 1024 * 1024),
        cost_estimate=pl.CostEstimate(flops=flops,
                                      transcendentals=transcendentals,
                                      bytes_accessed=bytes_accessed),
    )(x_stacked, w_qkv_t, b_qkv, w_o_t, b_o)


# ---------------------------------------------------------------------------
# Glue: spatiotemporal flatten / unflatten (pure reshapes)
# ---------------------------------------------------------------------------
def flatten_spatiotemporal(x, num_timesteps):
    B, N, T, D = x.shape
    assert T == num_timesteps
    return x.reshape(B, N * T, D)


def unflatten_spatiotemporal(x, num_timesteps):
    B, NT, D = x.shape
    return x.reshape(B, NT // num_timesteps, num_timesteps, D)


# ---------------------------------------------------------------------------
# Parameters: logical (f32, unpadded) + kernel (bf16, fused, padded, pre-scaled)
# ---------------------------------------------------------------------------
def _init_mha_params(key, lifting_dim):
    """Logical params mirroring nn.MultiheadAttention init (xavier_uniform in_proj, zero
    biases), stored pre-transposed: w_qkv_t [D,3D], b_qkv [1,3D], w_o_t [D,D], b_o [1,D]."""
    D = lifting_dim
    kq, kk, kv, ko = jax.random.split(key, 4)
    bound_in = (6.0 / (3 * D + D)) ** 0.5
    bound_out = (6.0 / (D + D)) ** 0.5
    wq = jax.random.uniform(kq, (D, D), jnp.float32, -bound_in, bound_in)
    wk = jax.random.uniform(kk, (D, D), jnp.float32, -bound_in, bound_in)
    wv = jax.random.uniform(kv, (D, D), jnp.float32, -bound_in, bound_in)
    wo = jax.random.uniform(ko, (D, D), jnp.float32, -bound_out, bound_out)
    w_qkv_t = jnp.concatenate([wq.T, wk.T, wv.T], axis=1)   # [D, 3D]
    b_qkv = jnp.zeros((1, 3 * D), jnp.float32)
    w_o_t = wo.T                                            # [D, D]
    b_o = jnp.zeros((1, D), jnp.float32)
    return (w_qkv_t, b_qkv, w_o_t, b_o)


def _pad_headwise(a, num_heads, hd, hdp):
    """Zero-pad the last axis [..., H*hd] -> [..., H*hdp] per head block."""
    lead = a.shape[:-1]
    a = a.reshape(*lead, num_heads, hd)
    pad = [(0, 0)] * (a.ndim - 1) + [(0, hdp - hd)]
    return jnp.pad(a, pad).reshape(*lead, num_heads * hdp)


def _make_kernel_params(logical, num_heads, hd, hdp, D, Dp):
    """One-time host-side transform: fold attention scale into Q, pad per head to hdp so
    Dp = H*hdp is a multiple of 128, fuse QKV, pre-transpose, cast weights to bf16."""
    w_qkv_t, b_qkv, w_o_t, b_o = logical
    scale = 1.0 / math.sqrt(hd)

    wq_t, wk_t, wv_t = w_qkv_t[:, :D], w_qkv_t[:, D:2 * D], w_qkv_t[:, 2 * D:]
    bq, bk, bv = b_qkv[:, :D], b_qkv[:, D:2 * D], b_qkv[:, 2 * D:]

    # Fold 1/sqrt(head_dim) into the Q projection (weight + bias).
    wq_t = wq_t * scale
    bq = bq * scale

    # Per-head zero padding of projection OUTPUT columns hd -> hdp.
    wq_t = _pad_headwise(wq_t, num_heads, hd, hdp)   # [D, Dp]
    wk_t = _pad_headwise(wk_t, num_heads, hd, hdp)
    wv_t = _pad_headwise(wv_t, num_heads, hd, hdp)
    bq = _pad_headwise(bq, num_heads, hd, hdp)       # [1, Dp]
    bk = _pad_headwise(bk, num_heads, hd, hdp)
    bv = _pad_headwise(bv, num_heads, hd, hdp)

    # Zero-pad contraction rows D -> Dp (activations are end-padded with zeros).
    w_qkv_t_pad = jnp.pad(jnp.concatenate([wq_t, wk_t, wv_t], axis=1),
                          ((0, Dp - D), (0, 0)))                      # [Dp, 3*Dp]
    b_qkv_pad = jnp.concatenate([bq, bk, bv], axis=1)                 # [1, 3*Dp]

    # Output projection: head-wise pad the ctx rows, end-pad the output columns.
    w_o_rows = _pad_headwise(w_o_t.T, num_heads, hd, hdp).T           # [Dp, D]
    w_o_t_pad = jnp.pad(w_o_rows, ((0, 0), (0, Dp - D)))              # [Dp, Dp]
    b_o_pad = jnp.pad(b_o, ((0, 0), (0, Dp - D)))                     # [1, Dp]

    return (w_qkv_t_pad.astype(jnp.bfloat16), b_qkv_pad.astype(jnp.float32),
            w_o_t_pad.astype(jnp.bfloat16), b_o_pad.astype(jnp.float32))


# ---------------------------------------------------------------------------
# SplitInputMHA module (parameters held in JAX, forward uses the Pallas kernel)
# ---------------------------------------------------------------------------
class SplitInputMHA:
    def __init__(self, lifting_dim, num_heads, num_timesteps, key):
        if lifting_dim % num_heads != 0:
            raise ValueError(
                f"lifting_dim={lifting_dim} must be divisible by num_heads={num_heads}")
        self.num_timesteps = num_timesteps
        self.num_heads = num_heads
        self.dim = lifting_dim
        self.head_dim = lifting_dim // num_heads
        # Pad the per-head dim so H * hdp is a multiple of 128 (lane-dense loads/stores).
        step = 128 // math.gcd(num_heads, 128)
        self.head_dim_padded = max(step, -(-self.head_dim // step) * step)
        self.dim_padded = num_heads * self.head_dim_padded

        k_pos, k_vel = jax.random.split(key)
        self.position_params = _init_mha_params(k_pos, lifting_dim)   # logical f32 (reference)
        self.velocity_params = _init_mha_params(k_vel, lifting_dim)
        kparams = [_make_kernel_params(p, num_heads, self.head_dim, self.head_dim_padded,
                                       self.dim, self.dim_padded)
                   for p in (self.position_params, self.velocity_params)]
        # Stack position/velocity parameters along a leading stream axis for the fused call.
        self.kernel_params = tuple(jnp.stack([p, v]) for p, v in zip(*kparams))

    def forward(self, batch):
        x_over_time = flatten_spatiotemporal(batch['x_0'], self.num_timesteps)
        v_over_time = flatten_spatiotemporal(batch['v_0'], self.num_timesteps)
        assert x_over_time.shape[-1] == v_over_time.shape[-1], (
            f'Positions and velocities must have the same last dimension. '
            f'Got {x_over_time.shape} and {v_over_time.shape}')
        xv = jnp.stack([x_over_time, v_over_time], axis=0)                 # [2, B, S, D]
        # Lane-dense, bf16 kernel I/O: zero-pad the feature axis to Dp and cast to bf16.
        # Padded columns are zero and the matching weight rows/cols are zero, so the first
        # D output columns are unchanged; padding is on D (not S), so softmax needs no mask.
        pad = self.dim_padded - self.dim
        xv = jnp.pad(xv, ((0, 0), (0, 0), (0, 0), (0, pad))).astype(jnp.bfloat16)
        out = split_mha_pallas(xv, self.kernel_params, self.num_heads, self.head_dim_padded)
        out = out[..., :self.dim].astype(jnp.float32)                      # drop pad columns
        batch = dict(batch)
        batch['x_0'] = unflatten_spatiotemporal(out[0], self.num_timesteps)
        batch['v_0'] = unflatten_spatiotemporal(out[1], self.num_timesteps)
        return batch


# ---------------------------------------------------------------------------
# Pure-JAX f32 reference (sanity check against the Pallas kernel)
# ---------------------------------------------------------------------------
def _mha_ref(x, params, num_heads):
    w_qkv_t, b_qkv, w_o_t, b_o = params
    B, S, D = x.shape
    hd = D // num_heads
    qkv = x @ w_qkv_t + b_qkv
    q, k, v = qkv[..., :D], qkv[..., D:2 * D], qkv[..., 2 * D:]
    q = q.reshape(B, S, num_heads, hd).transpose(0, 2, 1, 3)
    k = k.reshape(B, S, num_heads, hd).transpose(0, 2, 1, 3)
    v = v.reshape(B, S, num_heads, hd).transpose(0, 2, 1, 3)
    s = jnp.einsum('bhqd,bhkd->bhqk', q, k) / (hd ** 0.5)
    p = jax.nn.softmax(s, axis=-1)
    ctx = jnp.einsum('bhqk,bhkd->bhqd', p, v).transpose(0, 2, 1, 3).reshape(B, S, D)
    return ctx @ w_o_t + b_o


if __name__ == "__main__":
    # Small shapes: B=2 graphs, N=4 nodes, T=2 timesteps, lifting_dim=32, heads=4 (S = N*T = 8)
    B, N, T, D, H = 2, 4, 2, 32, 4
    key = jax.random.PRNGKey(0)
    k_x, k_v, k_params = jax.random.split(key, 3)

    batch = {
        'x_0': jax.random.normal(k_x, (B, N, T, D), jnp.float32),
        'v_0': jax.random.normal(k_v, (B, N, T, D), jnp.float32),
    }

    module = SplitInputMHA(lifting_dim=D, num_heads=H, num_timesteps=T, key=k_params)
    out = module.forward(batch)
    jax.block_until_ready(out['x_0'])
    jax.block_until_ready(out['v_0'])

    # Sanity check against a pure-JAX f32 reference.  Tolerance covers bf16 inputs/weights
    # (f32 accumulation) plus the approximate softmax reciprocal (~1e-3 relative).
    ref_x = unflatten_spatiotemporal(
        _mha_ref(flatten_spatiotemporal(batch['x_0'], T), module.position_params, H), T)
    ref_v = unflatten_spatiotemporal(
        _mha_ref(flatten_spatiotemporal(batch['v_0'], T), module.velocity_params, H), T)
    assert out['x_0'].shape == (B, N, T, D) and out['v_0'].shape == (B, N, T, D)
    assert jnp.allclose(out['x_0'], ref_x, rtol=5e-2, atol=5e-2), \
        float(jnp.max(jnp.abs(out['x_0'] - ref_x)))
    assert jnp.allclose(out['v_0'], ref_v, rtol=5e-2, atol=5e-2), \
        float(jnp.max(jnp.abs(out['v_0'] - ref_v)))

    print("KERNEL_OK")
</pallas_src>

<mosaic_0001>
module attributes {stable_mosaic.version = 11 : i64} {
  func.func @_split_mha_kernel(%arg0: i32, %arg1: i32, %arg2: memref<1x2x8x128xbf16, #tpu.memory_space<vmem>>, %arg3: memref<1x128x384xbf16, #tpu.memory_space<vmem>>, %arg4: memref<1x1x384xf32, #tpu.memory_space<vmem>>, %arg5: memref<1x128x128xbf16, #tpu.memory_space<vmem>>, %arg6: memref<1x1x128xf32, #tpu.memory_space<vmem>>, %arg7: memref<1x2x8x128xf32, #tpu.memory_space<vmem>>) attributes {dimension_semantics = [#tpu.dimension_semantics<parallel>, #tpu.dimension_semantics<parallel>], iteration_bounds = array<i64: 2, 1>, scalar_prefetch = 0 : i64, scratch_operands = 0 : i64, tpu.core_type = #tpu.core_type<tc>, window_params = [{transform_indices = @transform_0, window_bounds = array<i64: 1, 2, 8, 128>}, {transform_indices = @transform_1, window_bounds = array<i64: 1, 128, 384>}, {transform_indices = @transform_2, window_bounds = array<i64: 1, 1, 384>}, {transform_indices = @transform_3, window_bounds = array<i64: 1, 128, 128>}, {transform_indices = @transform_4, window_bounds = array<i64: 1, 1, 128>}, {transform_indices = @transform_5, window_bounds = array<i64: 1, 2, 8, 128>}]} {
    %c0 = arith.constant 0 : index
    %c0_0 = arith.constant 0 : index
    %c0_1 = arith.constant 0 : index
    %c0_2 = arith.constant 0 : index
    %0 = vector.load %arg2[%c0, %c0_0, %c0_1, %c0_2] : memref<1x2x8x128xbf16, #tpu.memory_space<vmem>>, vector<1x2x8x128xbf16>
    %1 = vector.shape_cast %0 : vector<1x2x8x128xbf16> to vector<2x8x128xbf16>
    %2 = vector.shape_cast %1 : vector<2x8x128xbf16> to vector<16x128xbf16>
    %c0_3 = arith.constant 0 : index
    %c0_4 = arith.constant 0 : index
    %c0_5 = arith.constant 0 : index
    %3 = vector.load %arg3[%c0_3, %c0_4, %c0_5] : memref<1x128x384xbf16, #tpu.memory_space<vmem>>, vector<1x128x384xbf16>
    %4 = vector.shape_cast %3 : vector<1x128x384xbf16> to vector<128x384xbf16>
    %cst = arith.constant dense<0.000000e+00> : vector<16x384xf32>
    %5 = tpu.matmul %2, %4, %cst {dimension_numbers = #tpu.dot_dimension_numbers<[1], [0], [0], [1], [0, 0, 1, 1], [], []>} : vector<16x128xbf16>, vector<128x384xbf16>, vector<16x384xf32> -> vector<16x384xf32>
    %c0_6 = arith.constant 0 : index
    %c0_7 = arith.constant 0 : index
    %c0_8 = arith.constant 0 : index
    %6 = vector.load %arg4[%c0_6, %c0_7, %c0_8] : memref<1x1x384xf32, #tpu.memory_space<vmem>>, vector<1x1x384xf32>
    %7 = vector.shape_cast %6 : vector<1x1x384xf32> to vector<1x384xf32>
    %8 = vector.broadcast %7 : vector<1x384xf32> to vector<16x384xf32>
    %9 = arith.addf %5, %8 : vector<16x384xf32>
    %10 = vector.extract_strided_slice %9 {offsets = [0, 0], sizes = [16, 128], strides = [1, 1]} : vector<16x384xf32> to vector<16x128xf32>
    %11 = vector.shape_cast %10 : vector<16x128xf32> to vector<2x8x4x32xf32>
    %12 = arith.truncf %11 : vector<2x8x4x32xf32> to vector<2x8x4x32xbf16>
    %13 = tpu.transpose %12, [0, 2, 1, 3] : vector<2x8x4x32xbf16> -> vector<2x4x8x32xbf16>
    %14 = vector.shape_cast %13 : vector<2x4x8x32xbf16> to vector<8x8x32xbf16>
    %15 = vector.extract_strided_slice %9 {offsets = [0, 128], sizes = [16, 128], strides = [1, 1]} : vector<16x384xf32> to vector<16x128xf32>
    %16 = vector.shape_cast %15 : vector<16x128xf32> to vector<2x8x4x32xf32>
    %17 = arith.truncf %16 : vector<2x8x4x32xf32> to vector<2x8x4x32xbf16>
    %18 = tpu.transpose %17, [0, 2, 1, 3] : vector<2x8x4x32xbf16> -> vector<2x4x8x32xbf16>
    %19 = vector.shape_cast %18 : vector<2x4x8x32xbf16> to vector<8x8x32xbf16>
    %20 = vector.extract_strided_slice %9 {offsets = [0, 256], sizes = [16, 128], strides = [1, 1]} : vector<16x384xf32> to vector<16x128xf32>
    %21 = vector.shape_cast %20 : vector<16x128xf32> to vector<2x8x4x32xf32>
    %22 = arith.truncf %21 : vector<2x8x4x32xf32> to vector<2x8x4x32xbf16>
    %23 = tpu.transpose %22, [0, 2, 1, 3] : vector<2x8x4x32xbf16> -> vector<2x4x8x32xbf16>
    %24 = vector.shape_cast %23 : vector<2x4x8x32xbf16> to vector<8x8x32xbf16>
    %cst_9 = arith.constant dense<0.000000e+00> : vector<8x8x8xf32>
    %25 = tpu.matmul %14, %19, %cst_9 {dimension_numbers = #tpu.dot_dimension_numbers<[2], [2], [1], [1], [0, 0, 0, 1, 1, 1], [0], [0]>} : vector<8x8x32xbf16>, vector<8x8x32xbf16>, vector<8x8x8xf32> -> vector<8x8x8xf32>
    %cst_10 = arith.constant dense<0xFF800000> : vector<8x8xf32>
    %26 = vector.multi_reduction <maximumf>, %25, %cst_10 [2] : vector<8x8x8xf32> to vector<8x8xf32>
    %27 = vector.shape_cast %26 : vector<8x8xf32> to vector<8x8x1xf32>
    %28 = vector.broadcast %27 : vector<8x8x1xf32> to vector<8x8x8xf32>
    %29 = arith.subf %25, %28 : vector<8x8x8xf32>
    %30 = math.exp %29 : vector<8x8x8xf32>
    %cst_11 = arith.constant dense<0.000000e+00> : vector<8x8xf32>
    %31 = vector.multi_reduction <add>, %30, %cst_11 [2] : vector<8x8x8xf32> to vector<8x8xf32>
    %32 = vector.shape_cast %31 : vector<8x8xf32> to vector<8x8x1xf32>
    %33 = tpu.reciprocal %32 {approx = true} : vector<8x8x1xf32> -> vector<8x8x1xf32>
    %34 = vector.broadcast %33 : vector<8x8x1xf32> to vector<8x8x8xf32>
    %35 = arith.mulf %30, %34 : vector<8x8x8xf32>
    %36 = arith.truncf %35 : vector<8x8x8xf32> to vector<8x8x8xbf16>
    %cst_12 = arith.constant dense<0.000000e+00> : vector<8x8x32xf32>
    %37 = tpu.matmul %36, %24, %cst_12 {dimension_numbers = #tpu.dot_dimension_numbers<[2], [1], [1], [2], [0, 0, 0, 1, 1, 2], [0], [0]>} : vector<8x8x8xbf16>, vector<8x8x32xbf16>, vector<8x8x32xf32> -> vector<8x8x32xf32>
    %38 = vector.shape_cast %37 : vector<8x8x32xf32> to vector<2x4x8x32xf32>
    %39 = tpu.transpose %38, [0, 2, 1, 3] : vector<2x4x8x32xf32> -> vector<2x8x4x32xf32>
    %40 = vector.shape_cast %39 : vector<2x8x4x32xf32> to vector<16x128xf32>
    %41 = arith.truncf %40 : vector<16x128xf32> to vector<16x128xbf16>
    %c0_13 = arith.constant 0 : index
    %c0_14 = arith.constant 0 : index
    %c0_15 = arith.constant 0 : index
    %42 = vector.load %arg5[%c0_13, %c0_14, %c0_15] : memref<1x128x128xbf16, #tpu.memory_space<vmem>>, vector<1x128x128xbf16>
    %43 = vector.shape_cast %42 : vector<1x128x128xbf16> to vector<128x128xbf16>
    %cst_16 = arith.constant dense<0.000000e+00> : vector<16x128xf32>
    %44 = tpu.matmul %41, %43, %cst_16 {dimension_numbers = #tpu.dot_dimension_numbers<[1], [0], [0], [1], [0, 0, 1, 1], [], []>} : vector<16x128xbf16>, vector<128x128xbf16>, vector<16x128xf32> -> vector<16x128xf32>
    %c0_17 = arith.constant 0 : index
    %c0_18 = arith.constant 0 : index
    %c0_19 = arith.constant 0 : index
    %45 = vector.load %arg6[%c0_17, %c0_18, %c0_19] : memref<1x1x128xf32, #tpu.memory_space<vmem>>, vector<1x1x128xf32>
    %46 = vector.shape_cast %45 : vector<1x1x128xf32> to vector<1x128xf32>
    %47 = vector.broadcast %46 : vector<1x128xf32> to vector<16x128xf32>
    %48 = arith.addf %44, %47 : vector<16x128xf32>
    %49 = vector.shape_cast %48 : vector<16x128xf32> to vector<2x8x128xf32>
    %c0_20 = arith.constant 0 : index
    %c0_21 = arith.constant 0 : index
    %c0_22 = arith.constant 0 : index
    %c0_23 = arith.constant 0 : index
    %50 = vector.load %arg7[%c0_20, %c0_21, %c0_22, %c0_23] : memref<1x2x8x128xf32, #tpu.memory_space<vmem>>, vector<1x2x8x128xf32>
    %51 = vector.shape_cast %50 : vector<1x2x8x128xf32> to vector<2x8x128xf32>
    %52 = vector.shape_cast %49 : vector<2x8x128xf32> to vector<1x2x8x128xf32>
    tpu.vector_store %arg7[%c0_20, %c0_21, %c0_22, %c0_23], %52 {strides = array<i32>} : memref<1x2x8x128xf32, #tpu.memory_space<vmem>>, vector<1x2x8x128xf32>,
    return
  }
  func.func @transform_0(%arg0: i32, %arg1: i32) -> (i32, i32, i32, i32) {
    %c0_i32 = arith.constant 0 : i32
    %c0_i32_0 = arith.constant 0 : i32
    %c0_i32_1 = arith.constant 0 : i32
    return %arg0, %arg1, %c0_i32, %c0_i32_0 : i32, i32, i32, i32
  }
  func.func @transform_1(%arg0: i32, %arg1: i32) -> (i32, i32, i32) {
    %c0_i32 = arith.constant 0 : i32
    %c0_i32_0 = arith.constant 0 : i32
    %c0_i32_1 = arith.constant 0 : i32
    return %arg0, %c0_i32, %c0_i32_0 : i32, i32, i32
  }
  func.func @transform_2(%arg0: i32, %arg1: i32) -> (i32, i32, i32) {
    %c0_i32 = arith.constant 0 : i32
    %c0_i32_0 = arith.constant 0 : i32
    %c0_i32_1 = arith.constant 0 : i32
    return %arg0, %c0_i32, %c0_i32_0 : i32, i32, i32
  }
  func.func @transform_3(%arg0: i32, %arg1: i32) -> (i32, i32, i32) {
    %c0_i32 = arith.constant 0 : i32
    %c0_i32_0 = arith.constant 0 : i32
    %c0_i32_1 = arith.constant 0 : i32
    return %arg0, %c0_i32, %c0_i32_0 : i32, i32, i32
  }
  func.func @transform_4(%arg0: i32, %arg1: i32) -> (i32, i32, i32) {
    %c0_i32 = arith.constant 0 : i32
    %c0_i32_0 = arith.constant 0 : i32
    %c0_i32_1 = arith.constant 0 : i32
    return %arg0, %c0_i32, %c0_i32_0 : i32, i32, i32
  }
  func.func @transform_5(%arg0: i32, %arg1: i32) -> (i32, i32, i32, i32) {
    %c0_i32 = arith.constant 0 : i32
    %c0_i32_0 = arith.constant 0 : i32
    %c0_i32_1 = arith.constant 0 : i32
    return %arg0, %arg1, %c0_i32, %c0_i32_0 : i32, i32, i32, i32
  }
}

</mosaic_0001>

<llo_original>
// kernel: tpu_custom_call.1
$region0: #{tpu_custom_call.1}
  #allocation0 [shape = 'u32[]', space=smem, size = 0x4, offset = 0x4, fixed_abs, tag = 'smem constant byte address 0x4 - core index']
  #allocation1 [shape = 'u32[144,128]{1,0:T(1,128)}', space=vmem, size = 0x12000, scoped, tag = 'internal scratch']
  %s0 = inlined_call_operand.hbm [shape: bf16[2,2,8,128], index: 0, kind: input, shape index: {}]
  %s1 = inlined_call_operand.hbm [shape: bf16[2,128,384], index: 1, kind: input, shape index: {}]
  %s2 = inlined_call_operand.hbm [shape: f32[2,1,384], index: 2, kind: input, shape index: {}]
  %s3 = inlined_call_operand.hbm [shape: bf16[2,128,128], index: 3, kind: input, shape index: {}]
  %s4 = inlined_call_operand.vmem [shape: f32[2,1,128], index: 4, kind: input, shape index: {}]
  %s5 = inlined_call_operand.hbm [shape: f32[2,2,8,128], index: 5, kind: output, shape index: {}]
  %s6 = sld [smem:[#allocation0]]
  $region69: #{tpu_custom_call.1} parent=0
    _
  %s8 = ssub.s32 1, %s6
  %s9 = scalar_select 0, %s8, %s6
  $region1: #{tpu_custom_call.1} parent=0
    #allocation2 [shape = 'u8[8192]{0}', space=vmem, size = 0x2000, scoped, tag = 'input window, operand 0']
    #allocation3 [shape = 's32[2]{0}', space=sflag, size = 0x8, scoped, tag = 'scoped memory for tpu_custom_call.1']
    #allocation4 [shape = 's32[2]{0}', space=sflag, size = 0x8, scoped, tag = 'scoped memory for tpu_custom_call.1']
    #allocation5 [shape = 'u8[196608]{0}', space=vmem, size = 0x30000, scoped, tag = 'input window, operand 1']
    #allocation6 [shape = 's32[2]{0}', space=sflag, size = 0x8, scoped, tag = 'scoped memory for tpu_custom_call.1']
    #allocation7 [shape = 'u8[3072]{0}', space=vmem, size = 0xc00, scoped, tag = 'input window, operand 2']
    #allocation8 [shape = 'u8[65536]{0}', space=vmem, size = 0x10000, scoped, tag = 'input window, operand 3']
    #allocation9 [shape = 's32[2]{0}', space=sflag, size = 0x8, scoped, tag = 'scoped memory for tpu_custom_call.1']
    #allocation10 [shape = 'u8[16384]{0}', space=vmem, size = 0x4000, scoped, tag = 'output window, operand 0']
    %10 = vsyncpa [#allocation3], 0
    %s11 = scalar_lea.sflag [#allocation3], 1
    %12 = vsyncpa %s11, 0
    %13 = vsyncpa [#allocation6], 0
    %s14 = scalar_lea.sflag [#allocation6], 1
    %15 = vsyncpa %s14, 0
    %16 = vsyncpa [#allocation9], 0
    %s17 = scalar_lea.sflag [#allocation9], 1
    %18 = vsyncpa %s17, 0
    %19 = vsyncpa [#allocation4], 0
    %s20 = scalar_lea.sflag [#allocation4], 1
    %21 = vsyncpa %s20, 0
    loop: start=0, step=1, limit=4
    $region2: #{tpu_custom_call.1} parent=1 // loop_pre_header
      _
    $region3: #{tpu_custom_call.1} parent=1 // loop_header
      %s23 = sphi 0, %s27
      %p24 = scmp.ge.s32.totalorder %s23, 4
      %s30 = sphi 0, %s42
      %s31 = sphi 0, %s38
      %s32 = sphi 0, %s30
      %s33 = sphi 0, %s31
      %s34 = sphi 0, %s32
      %s35 = sphi 0, %s33
      %s47 = sphi 0, %s49
      %s50 = sphi 0, %s47
      %s51 = sphi 0, %s50
      %s67 = sphi 0, %s51
      %s73 = sphi 0, %s75
      %s76 = sphi 0, %s73
      %s77 = sphi 0, %s76
      %s93 = sphi 0, %s77
      %s99 = sphi 0, %s101
      %s102 = sphi 0, %s99
      %s103 = sphi 0, %s102
      %s119 = sphi 0, %s103
      %s125 = sphi 0, %s127
      %s128 = sphi 0, %s125
      %s129 = sphi 0, %s128
      %s145 = sphi 0, %s129
      %s151 = sphi 0, %s153
      %s154 = sphi 0, %s151
      %s155 = sphi 0, %s154
      %s171 = sphi 0, %s155
      %s179 = sphi 0, %s181
      %s182 = sphi 0, %s179
      %s183 = sphi 0, %s182
      %s199 = sphi 0, %s183
    $region4: #{tpu_custom_call.1} parent=1 // loop_header_branch
      %26 = sbr.rel (%p24) target = $region8
    $region5: #{tpu_custom_call.1} parent=1 // loop_body
      %s28 = ssub.s32 %s23, 1
      %s29 = ssub.s32 %s23, 2
      %s36 = sadd.s32 1, %s31
      %p37 = scmp.ge.s32.totalorder %s36, 1
      %s38 = scalar_select %p37, 0, %s36
      %s39 = sadd.s32 1, %s30
      %s40 = scalar_select %p37, %s39, %s30
      %p41 = scmp.ge.s32.totalorder %s40, 2
      %s42 = scalar_select %p41, 0, %s40
      %s43 = ssub.s32 %s30, %s42
      %s44 = ssub.s32 %s31, %s38
      %s45 = sor.u32 %s43, %s44
      %p46 = scmp.eq.s32.totalorder %s45, 0
      %s48 = sadd.s32 %s47, 1
      %s49 = scalar_select %p46, %s47, %s48
      %p52 = pneg %p46
      %p53 = scmp.eq.s32.totalorder %s23, 1
      %p54 = por %p52, %p53
      %p55 = scmp.ne.s32.totalorder %s47, %s50
      %p56 = scmp.eq.s32.totalorder %s23, 0
      %p57 = por %p55, %p56
      %p58 = scmp.ne.s32.totalorder %s47, %s50
      %p59 = scmp.eq.s32.totalorder %s28, 1
      %p60 = por %p58, %p59
      %p61 = scmp.ne.s32.totalorder %s50, %s51
      %p62 = scmp.eq.s32.totalorder %s28, 0
      %p63 = por %p61, %p62
      %p64 = scmp.ne.s32.totalorder %s50, %s51
      %p65 = scmp.eq.s32.totalorder %s29, 1
      %p66 = por %p64, %p65
      %p68 = scmp.ne.s32.totalorder %s51, %s67
      %p69 = scmp.eq.s32.totalorder %s29, 0
      %p70 = por %p68, %p69
      %s71 = ssub.s32 %s30, %s42
      %p72 = scmp.eq.s32.totalorder %s71, 0
      %s74 = sadd.s32 %s73, 1
      %s75 = scalar_select %p72, %s73, %s74
      %p78 = pneg %p72
      %p79 = scmp.eq.s32.totalorder %s23, 1
      %p80 = por %p78, %p79
      %p81 = scmp.ne.s32.totalorder %s73, %s76
      %p82 = scmp.eq.s32.totalorder %s23, 0
      %p83 = por %p81, %p82
      %p84 = scmp.ne.s32.totalorder %s73, %s76
      %p85 = scmp.eq.s32.totalorder %s28, 1
      %p86 = por %p84, %p85
      %p87 = scmp.ne.s32.totalorder %s76, %s77
      %p88 = scmp.eq.s32.totalorder %s28, 0
      %p89 = por %p87, %p88
      %p90 = scmp.ne.s32.totalorder %s76, %s77
      %p91 = scmp.eq.s32.totalorder %s29, 1
      %p92 = por %p90, %p91
      %p94 = scmp.ne.s32.totalorder %s77, %s93
      %p95 = scmp.eq.s32.totalorder %s29, 0
      %p96 = por %p94, %p95
      %s97 = ssub.s32 %s30, %s42
      %p98 = scmp.eq.s32.totalorder %s97, 0
      %s100 = sadd.s32 %s99, 1
      %s101 = scalar_select %p98, %s99, %s100
      %p104 = pneg %p98
      %p105 = scmp.eq.s32.totalorder %s23, 1
      %p106 = por %p104, %p105
      %p107 = scmp.ne.s32.totalorder %s99, %s102
      %p108 = scmp.eq.s32.totalorder %s23, 0
      %p109 = por %p107, %p108
      %p110 = scmp.ne.s32.totalorder %s99, %s102
      %p111 = scmp.eq.s32.totalorder %s28, 1
      %p112 = por %p110, %p111
      %p113 = scmp.ne.s32.totalorder %s102, %s103
      %p114 = scmp.eq.s32.totalorder %s28, 0
      %p115 = por %p113, %p114
      %p116 = scmp.ne.s32.totalorder %s102, %s103
      %p117 = scmp.eq.s32.totalorder %s29, 1
      %p118 = por %p116, %p117
      %p120 = scmp.ne.s32.totalorder %s103, %s119
      %p121 = scmp.eq.s32.totalorder %s29, 0
      %p122 = por %p120, %p121
      %s123 = ssub.s32 %s30, %s42
      %p124 = scmp.eq.s32.totalorder %s123, 0
      %s126 = sadd.s32 %s125, 1
      %s127 = scalar_select %p124, %s125, %s126
      %p130 = pneg %p124
      %p131 = scmp.eq.s32.totalorder %s23, 1
      %p132 = por %p130, %p131
      %p133 = scmp.ne.s32.totalorder %s125, %s128
      %p134 = scmp.eq.s32.totalorder %s23, 0
      %p135 = por %p133, %p134
      %p136 = scmp.ne.s32.totalorder %s125, %s128
      %p137 = scmp.eq.s32.totalorder %s28, 1
      %p138 = por %p136, %p137
      %p139 = scmp.ne.s32.totalorder %s128, %s129
      %p140 = scmp.eq.s32.totalorder %s28, 0
      %p141 = por %p139, %p140
      %p142 = scmp.ne.s32.totalorder %s128, %s129
      %p143 = scmp.eq.s32.totalorder %s29, 1
      %p144 = por %p142, %p143
      %p146 = scmp.ne.s32.totalorder %s129, %s145
      %p147 = scmp.eq.s32.totalorder %s29, 0
      %p148 = por %p146, %p147
      %s149 = ssub.s32 %s30, %s42
      %p150 = scmp.eq.s32.totalorder %s149, 0
      %s152 = sadd.s32 %s151, 1
      %s153 = scalar_select %p150, %s151, %s152
      %p156 = pneg %p150
      %p157 = scmp.eq.s32.totalorder %s23, 1
      %p158 = por %p156, %p157
      %p159 = scmp.ne.s32.totalorder %s151, %s154
      %p160 = scmp.eq.s32.totalorder %s23, 0
      %p161 = por %p159, %p160
      %p162 = scmp.ne.s32.totalorder %s151, %s154
      %p163 = scmp.eq.s32.totalorder %s28, 1
      %p164 = por %p162, %p163
      %p165 = scmp.ne.s32.totalorder %s154, %s155
      %p166 = scmp.eq.s32.totalorder %s28, 0
      %p167 = por %p165, %p166
      %p168 = scmp.ne.s32.totalorder %s154, %s155
      %p169 = scmp.eq.s32.totalorder %s29, 1
      %p170 = por %p168, %p169
      %p172 = scmp.ne.s32.totalorder %s155, %s171
      %p173 = scmp.eq.s32.totalorder %s29, 0
      %p174 = por %p172, %p173
      %s175 = ssub.s32 %s30, %s42
      %s176 = ssub.s32 %s31, %s38
      %s177 = sor.u32 %s175, %s176
      %p178 = scmp.eq.s32.totalorder %s177, 0
      %s180 = sadd.s32 %s179, 1
      %s181 = scalar_select %p178, %s179, %s180
      %p184 = pneg %p178
      %p185 = scmp.eq.s32.totalorder %s23, 1
      %p186 = por %p184, %p185
      %p187 = scmp.ne.s32.totalorder %s179, %s182
      %p188 = scmp.eq.s32.totalorder %s23, 0
      %p189 = por %p187, %p188
      %p190 = scmp.ne.s32.totalorder %s179, %s182
      %p191 = scmp.eq.s32.totalorder %s28, 1
      %p192 = por %p190, %p191
      %p193 = scmp.ne.s32.totalorder %s182, %s183
      %p194 = scmp.eq.s32.totalorder %s28, 0
      %p195 = por %p193, %p194
      %p196 = scmp.ne.s32.totalorder %s182, %s183
      %p197 = scmp.eq.s32.totalorder %s29, 1
      %p198 = por %p196, %p197
      %p200 = scmp.ne.s32.totalorder %s183, %s199
      %p201 = scmp.eq.s32.totalorder %s29, 0
      %p202 = por %p200, %p201
      %p203 = scmp.le.s32.totalorder 1, %s23
      %p204 = scmp.lt.s32.totalorder %s23, 3
      %p205 = pnand %p203, %p204
      %p206 = pneg %p205
      // Predicated region
      $region9: #{tpu_custom_call.1} parent=5 // pred_check
        _
      $region10: #{tpu_custom_call.1} parent=5 // pred_check_branch
        %208 = sbr.rel (%p205) target = $region12
      $region11: #{tpu_custom_call.1} parent=5 // pred_region
        %s209 = ssub.s32 %s23, 1
      $region12: #{tpu_custom_call.1} parent=5 // pred_fallthru
        _
      %p210 = scmp.lt.s32.totalorder %s23, 2
      // Predicated region
      $region13: #{tpu_custom_call.1} parent=5 // pred_check
        %p211 = pneg %p210
      $region14: #{tpu_custom_call.1} parent=5 // pred_check_branch
        %213 = sbr.rel (%p211) target = $region16
      $region15: #{tpu_custom_call.1} parent=5 // pred_region
        // Predicated region
        $region17: #{tpu_custom_call.1} parent=15 // pred_check
          %p214 = pneg %p57
        $region18: #{tpu_custom_call.1} parent=15 // pred_check_branch
          %216 = sbr.rel (%p214) target = $region20
        $region19: #{tpu_custom_call.1} parent=15 // pred_region
          %s217 = sand.u32 %s47, 1
          %s218 = scalar_lea.sflag [#allocation3], %s217
          %s219 = sand.u32 %s47, 1
          %s220 = smul.addr %s219, 8
          %s221 = scalar_lea.vmem [#allocation2], %s220
          %s222 = smul.u32 2, %s31
          %s224 = ssub.s32 128, 128
          %225 = vsyncadd %s218, %s224
          %s226 = smul.addr %s30, 2
          %s227 = sadd.s32 %s222, %s226
          %s228 = smul.addr %s227, 64
          %s229 = scalar_lea.hbm %s0, %s228
          %s230 = sshll.u32 %s221, 4
          %s231 = int_to_ptr.vmem [resolvable:$true] %s230
          %236 = dma.hbm_to_vmem [thread:$0]  %s229, 128, %s231, %s218, 64, 64, 4
        $region20: #{tpu_custom_call.1} parent=15 // pred_fallthru
          _
        // Predicated region
        $region21: #{tpu_custom_call.1} parent=15 // pred_check
          %p237 = pneg %p83
        $region22: #{tpu_custom_call.1} parent=15 // pred_check_branch
          %239 = sbr.rel (%p237) target = $region24
        $region23: #{tpu_custom_call.1} parent=15 // pred_region
          %s240 = sand.u32 %s23, 1
          %s241 = scalar_lea.sflag [#allocation6], %s240
          %s242 = sand.u32 %s73, 1
          %s243 = smul.addr %s242, 192
          %s244 = scalar_lea.vmem [#allocation5], %s243
          %s246 = ssub.s32 3072, 3072
          %247 = vsyncadd %s241, %s246
          %s248 = smul.addr %s30, 48
          %s249 = smul.addr %s248, 64
          %s250 = scalar_lea.hbm %s1, %s249
          %s251 = sshll.u32 %s244, 4
          %s252 = int_to_ptr.vmem [resolvable:$true] %s251
          %257 = dma.hbm_to_vmem [thread:$0]  %s250, 3072, %s252, %s241, 192, 192, 12
        $region24: #{tpu_custom_call.1} parent=15 // pred_fallthru
          _
        // Predicated region
        $region25: #{tpu_custom_call.1} parent=15 // pred_check
          %p258 = pneg %p109
        $region26: #{tpu_custom_call.1} parent=15 // pred_check_branch
          %260 = sbr.rel (%p258) target = $region28
        $region27: #{tpu_custom_call.1} parent=15 // pred_region
          %s261 = sand.u32 %s23, 1
          %s262 = scalar_lea.sflag [#allocation6], %s261
          %s263 = sand.u32 %s99, 1
          %s264 = smul.addr %s263, 3
          %s265 = scalar_lea.vmem [#allocation7], %s264
          %s267 = ssub.s32 48, 48
          %268 = vsyncadd %s262, %s267
          %s269 = smul.addr %s30, 3
          %s270 = smul.addr %s269, 16
          %s271 = scalar_lea.hbm %s2, %s270
          %s273 = sshll.u32 %s265, 4
          %s274 = int_to_ptr.vmem [resolvable:$true] %s273
          %276 = dma.hbm_to_vmem [thread:$0]  %s271, 48, %s274, %s262
        $region28: #{tpu_custom_call.1} parent=15 // pred_fallthru
          _
        // Predicated region
        $region29: #{tpu_custom_call.1} parent=15 // pred_check
          %p277 = pneg %p135
        $region30: #{tpu_custom_call.1} parent=15 // pred_check_branch
          %279 = sbr.rel (%p277) target = $region32
        $region31: #{tpu_custom_call.1} parent=15 // pred_region
          %s280 = sand.u32 %s125, 1
          %s281 = scalar_lea.sflag [#allocation9], %s280
          %s282 = sand.u32 %s125, 1
          %s283 = smul.addr %s282, 64
          %s284 = scalar_lea.vmem [#allocation8], %s283
          %s286 = ssub.s32 1024, 1024
          %287 = vsyncadd %s281, %s286
          %s288 = smul.addr %s30, 16
          %s289 = smul.addr %s288, 64
          %s290 = scalar_lea.hbm %s3, %s289
          %s291 = sshll.u32 %s284, 4
          %s292 = int_to_ptr.vmem [resolvable:$true] %s291
          %297 = dma.hbm_to_vmem [thread:$0]  %s290, 1024, %s292, %s281, 64, 64, 4
        $region32: #{tpu_custom_call.1} parent=15 // pred_fallthru
          _
        // Predicated region
        $region33: #{tpu_custom_call.1} parent=15 // pred_check
          %p298 = pneg %p161
        $region34: #{tpu_custom_call.1} parent=15 // pred_check_branch
          %300 = sbr.rel (%p298) target = $region36
        $region35: #{tpu_custom_call.1} parent=15 // pred_region
          %p301 = scmp.lt.s32.totalorder %s30, 1
          %s302 = scalar_select %p301, %s30, 1
          %s303 = scalar_lea.vmem %s4, %s302
        $region36: #{tpu_custom_call.1} parent=15 // pred_fallthru
          _
      $region16: #{tpu_custom_call.1} parent=5 // pred_fallthru
        _
      %p304 = scmp.le.s32.totalorder 1, %s23
      %p305 = scmp.lt.s32.totalorder %s23, 3
      %p306 = pnand %p304, %p305
      %p307 = pneg %p306
      // Predicated region
      $region37: #{tpu_custom_call.1} parent=5 // pred_check
        _
      $region38: #{tpu_custom_call.1} parent=5 // pred_check_branch
        %309 = sbr.rel (%p306) target = $region40
      $region39: #{tpu_custom_call.1} parent=5 // pred_region
        %s310 = ssub.s32 %s23, 1
        %s311 = sand.u32 %s50, 1
        %s312 = scalar_lea.sflag [#allocation3], %s311
        %s313 = sand.u32 %s50, 1
        %s314 = smul.addr %s313, 8
        %s315 = scalar_lea.vmem [#allocation2], %s314
        // Predicated region
        $region41: #{tpu_custom_call.1} parent=39 // pred_check
          %p316 = pneg %p63
        $region42: #{tpu_custom_call.1} parent=39 // pred_check_branch
          %318 = sbr.rel (%p316) target = $region44
        $region43: #{tpu_custom_call.1} parent=39 // pred_region
          %319 = dma.done %s312, 128
        $region44: #{tpu_custom_call.1} parent=39 // pred_fallthru
          _
        %s320 = sand.u32 %s28, 1
        %s321 = scalar_lea.sflag [#allocation6], %s320
        %s322 = sand.u32 %s76, 1
        %s323 = smul.addr %s322, 192
        %s324 = scalar_lea.vmem [#allocation5], %s323
        // Predicated region
        $region45: #{tpu_custom_call.1} parent=39 // pred_check
          %p325 = pneg %p89
        $region46: #{tpu_custom_call.1} parent=39 // pred_check_branch
          %327 = sbr.rel (%p325) target = $region48
        $region47: #{tpu_custom_call.1} parent=39 // pred_region
          %328 = dma.done %s321, 3072
        $region48: #{tpu_custom_call.1} parent=39 // pred_fallthru
          _
        %s329 = sand.u32 %s28, 1
        %s330 = scalar_lea.sflag [#allocation6], %s329
        %s331 = sand.u32 %s102, 1
        %s332 = smul.addr %s331, 3
        %s333 = scalar_lea.vmem [#allocation7], %s332
        // Predicated region
        $region49: #{tpu_custom_call.1} parent=39 // pred_check
          %p334 = pneg %p115
        $region50: #{tpu_custom_call.1} parent=39 // pred_check_branch
          %336 = sbr.rel (%p334) target = $region52
        $region51: #{tpu_custom_call.1} parent=39 // pred_region
          %337 = dma.done %s330, 48
        $region52: #{tpu_custom_call.1} parent=39 // pred_fallthru
          _
        %s338 = sand.u32 %s128, 1
        %s339 = scalar_lea.sflag [#allocation9], %s338
        %s340 = sand.u32 %s128, 1
        %s341 = smul.addr %s340, 64
        %s342 = scalar_lea.vmem [#allocation8], %s341
        // Predicated region
        $region53: #{tpu_custom_call.1} parent=39 // pred_check
          %p343 = pneg %p141
        $region54: #{tpu_custom_call.1} parent=39 // pred_check_branch
          %345 = sbr.rel (%p343) target = $region56
        $region55: #{tpu_custom_call.1} parent=39 // pred_region
          %346 = dma.done %s339, 1024
        $region56: #{tpu_custom_call.1} parent=39 // pred_fallthru
          _
        %s347 = sand.u32 %s50, 1
        %s348 = scalar_lea.sflag [#allocation3], %s347
        %s349 = sand.u32 %s50, 1
        %s350 = smul.addr %s349, 8
        %s351 = scalar_lea.vmem [#allocation2], %s350
        %p352 = pneg %p63
        %p353 = pneg %p60
        %s354 = sand.u32 %s28, 1
        %s355 = scalar_lea.sflag [#allocation6], %s354
        %s356 = sand.u32 %s76, 1
        %s357 = smul.addr %s356, 192
        %s358 = scalar_lea.vmem [#allocation5], %s357
        %p359 = pneg %p89
        %p360 = pneg %p86
        %s361 = sand.u32 %s28, 1
        %s362 = scalar_lea.sflag [#allocation6], %s361
        %s363 = sand.u32 %s102, 1
        %s364 = smul.addr %s363, 3
        %s365 = scalar_lea.vmem [#allocation7], %s364
        %p366 = pneg %p115
        %p367 = pneg %p112
        %s368 = sand.u32 %s128, 1
        %s369 = scalar_lea.sflag [#allocation9], %s368
        %s370 = sand.u32 %s128, 1
        %s371 = smul.addr %s370, 64
        %s372 = scalar_lea.vmem [#allocation8], %s371
        %p373 = pneg %p141
        %p374 = pneg %p138
        %p375 = scmp.lt.s32.totalorder %s32, 1
        %s376 = scalar_select %p375, %s32, 1
        %s377 = scalar_lea.vmem %s4, %s376
        %p378 = pneg %p167
        %p379 = pneg %p164
        %p380 = pneg %p195
        %p381 = pneg %p192
        %s382 = sand.u32 %s182, 1
        %s383 = scalar_lea.sflag [#allocation4], %s382
        %s384 = sand.u32 %s182, 1
        %s385 = smul.addr %s384, 16
        %s386 = scalar_lea.vmem [#allocation10], %s385
        %s387 = smul.u32 2, %s33
        %p388 = scmp.lt.s32.totalorder %s32, 1
        %s389 = scalar_select %p388, %s32, 1
        %s390 = scalar_lea.vmem %s4, %s389
        %s391 = smul.u32 2, %s33
        %v393 = vld [vmem:[%s315] sm:$0xf]
        %v394 = vld [vmem:[%s315 + $0x4] sm:$0xf]
        %v395 = vld [vmem:[%s324] sm:$0xff]
        %v396 = vld [vmem:[%s324 + $0x8] sm:$0xf]
        %v397 = vld [vmem:[%s324 + $0xc] sm:$0xff]
        %v398 = vld [vmem:[%s324 + $0x14] sm:$0xf]
        %v399 = vld [vmem:[%s324 + $0x18] sm:$0xff]
        %v400 = vld [vmem:[%s324 + $0x20] sm:$0xf]
        %v401 = vld [vmem:[%s324 + $0x24] sm:$0xff]
        %v402 = vld [vmem:[%s324 + $0x2c] sm:$0xf]
        %v403 = vld [vmem:[%s324 + $0x30] sm:$0xff]
        %v404 = vld [vmem:[%s324 + $0x38] sm:$0xf]
        %v405 = vld [vmem:[%s324 + $0x3c] sm:$0xff]
        %v406 = vld [vmem:[%s324 + $0x44] sm:$0xf]
        %v407 = vld [vmem:[%s324 + $0x48] sm:$0xff]
        %v408 = vld [vmem:[%s324 + $0x50] sm:$0xf]
        %v409 = vld [vmem:[%s324 + $0x54] sm:$0xff]
        %v410 = vld [vmem:[%s324 + $0x5c] sm:$0xf]
        %v411 = vld [vmem:[%s324 + $0x60] sm:$0xff]
        %v412 = vld [vmem:[%s324 + $0x68] sm:$0xf]
        %v413 = vld [vmem:[%s324 + $0x6c] sm:$0xff]
        %v414 = vld [vmem:[%s324 + $0x74] sm:$0xf]
        %v415 = vld [vmem:[%s324 + $0x78] sm:$0xff]
        %v416 = vld [vmem:[%s324 + $0x80] sm:$0xf]
        %v417 = vld [vmem:[%s324 + $0x84] sm:$0xff]
        %v418 = vld [vmem:[%s324 + $0x8c] sm:$0xf]
        %v419 = vld [vmem:[%s324 + $0x90] sm:$0xff]
        %v420 = vld [vmem:[%s324 + $0x98] sm:$0xf]
        %v421 = vld [vmem:[%s324 + $0x9c] sm:$0xff]
        %v422 = vld [vmem:[%s324 + $0xa4] sm:$0xf]
        %v423 = vld [vmem:[%s324 + $0xa8] sm:$0xff]
        %v424 = vld [vmem:[%s324 + $0xb0] sm:$0xf]
        %v425 = vld [vmem:[%s324 + $0xb4] sm:$0xff]
        %v426 = vld [vmem:[%s324 + $0xbc] sm:$0xf]
        %v427 = vld [vmem:[%s333] sm:$0x7]
        %v429 = vlaneseq
        %v430 = vshrl.u32 %v429, 7
        %v431 = vsub.s32 0, %v430
        %v432 = vrot.slane %v427, %v431
        %v433 = vlaneseq
        %v434 = vshrl.u32 %v433, 7
        %v435 = vsub.s32 1, %v434
        %v436 = vrot.slane %v427, %v435
        %v437 = vlaneseq
        %v438 = vshrl.u32 %v437, 7
        %v439 = vsub.s32 2, %v438
        %v440 = vrot.slane %v427, %v439
        %v446 = vunpack.c.l.b16 %v393
        %v447 = vunpack.c.l.b16 %v394
        %v448 = vpack.c.b16 %v447, %v446
        %v482 = vunpack.c.l.b16 %v395
        %v483 = vunpack.c.h.b16 %v395
        %v484 = vunpack.c.l.b16 %v396
        %v485 = vunpack.c.l.b16 %v397
        %v486 = vunpack.c.h.b16 %v397
        %v487 = vunpack.c.l.b16 %v398
        %v488 = vunpack.c.l.b16 %v399
        %v489 = vunpack.c.h.b16 %v399
        %v490 = vunpack.c.l.b16 %v400
        %v491 = vunpack.c.l.b16 %v401
        %v492 = vunpack.c.h.b16 %v401
        %v493 = vunpack.c.l.b16 %v402
        %v494 = vunpack.c.l.b16 %v403
        %v495 = vunpack.c.h.b16 %v403
        %v496 = vunpack.c.l.b16 %v404
        %v497 = vunpack.c.l.b16 %v405
        %v498 = vunpack.c.h.b16 %v405
        %v499 = vunpack.c.l.b16 %v406
        %v500 = vunpack.c.l.b16 %v407
        %v501 = vunpack.c.h.b16 %v407
        %v502 = vunpack.c.l.b16 %v408
        %v503 = vunpack.c.l.b16 %v409
        %v504 = vunpack.c.h.b16 %v409
        %v505 = vunpack.c.l.b16 %v410
        %v506 = vunpack.c.l.b16 %v411
        %v507 = vunpack.c.h.b16 %v411
        %v508 = vunpack.c.l.b16 %v412
        %v509 = vunpack.c.l.b16 %v413
        %v510 = vunpack.c.h.b16 %v413
        %v511 = vunpack.c.l.b16 %v414
        %v512 = vunpack.c.l.b16 %v415
        %v513 = vunpack.c.h.b16 %v415
        %v514 = vunpack.c.l.b16 %v416
        %v515 = vunpack.c.l.b16 %v417
        %v516 = vunpack.c.h.b16 %v417
        %v517 = vunpack.c.l.b16 %v418
        %v518 = vunpack.c.l.b16 %v419
        %v519 = vunpack.c.h.b16 %v419
        %v520 = vunpack.c.l.b16 %v420
        %v521 = vunpack.c.l.b16 %v421
        %v522 = vunpack.c.h.b16 %v421
        %v523 = vunpack.c.l.b16 %v422
        %v524 = vunpack.c.l.b16 %v423
        %v525 = vunpack.c.h.b16 %v423
        %v526 = vunpack.c.l.b16 %v424
        %v527 = vunpack.c.l.b16 %v425
        %v528 = vunpack.c.h.b16 %v425
        %v529 = vunpack.c.l.b16 %v426
        %v530 = vpack.c.b16 %v485, %v482
        %v531 = vpack.c.b16 %v486, %v483
        %v532 = vpack.c.b16 %v487, %v484
        %v533 = vpack.c.b16 %v491, %v488
        %v534 = vpack.c.b16 %v492, %v489
        %v535 = vpack.c.b16 %v493, %v490
        %v536 = vpack.c.b16 %v497, %v494
        %v537 = vpack.c.b16 %v498, %v495
        %v538 = vpack.c.b16 %v499, %v496
        %v539 = vpack.c.b16 %v503, %v500
        %v540 = vpack.c.b16 %v504, %v501
        %v541 = vpack.c.b16 %v505, %v502
        %v542 = vpack.c.b16 %v509, %v506
        %v543 = vpack.c.b16 %v510, %v507
        %v544 = vpack.c.b16 %v511, %v508
        %v545 = vpack.c.b16 %v515, %v512
        %v546 = vpack.c.b16 %v516, %v513
        %v547 = vpack.c.b16 %v517, %v514
        %v548 = vpack.c.b16 %v521, %v518
        %v549 = vpack.c.b16 %v522, %v519
        %v550 = vpack.c.b16 %v523, %v520
        %v551 = vpack.c.b16 %v527, %v524
        %v552 = vpack.c.b16 %v528, %v525
        %v553 = vpack.c.b16 %v529, %v526
        %578 = vmatprep.subr.bf16.mxu0 %v552
        %579 = vmatpush1.bf16.msra.mxu0 %v551
        %580 = vmatprep.subr.bf16.mxu0 %v549
        %581 = vmatpush1.bf16.msra.mxu0 %v548
        %582 = vmatprep.subr.bf16.mxu0 %v546
        %583 = vmatpush1.bf16.msra.mxu0 %v545
        %584 = vmatprep.subr.bf16.mxu0 %v543
        %585 = vmatpush1.bf16.msra.mxu0 %v542
        %586 = vmatprep.subr.bf16.mxu0 %v540
        %587 = vmatpush1.bf16.msra.mxu0 %v539
        %588 = vmatprep.subr.bf16.mxu0 %v537
        %589 = vmatpush1.bf16.msra.mxu0 %v536
        %590 = vmatprep.subr.bf16.mxu0 %v534
        %591 = vmatpush1.bf16.msra.mxu0 %v533
        %592 = vmatprep.subr.bf16.mxu0 %v531
        %593 = vmatpush1.bf16.msra.mxu0 %v530
        %594 = vmatprep.subr.bf16.mxu0 0
        %595 = vmatpush2.bf16.msra.mxu0 0
        %596 = vmatprep.subr.bf16.mxu0 0
        %597 = vmatpush2.bf16.msra.mxu0 0
        %598 = vmatprep.subr.bf16.mxu0 0
        %599 = vmatpush2.bf16.msra.mxu0 0
        %600 = vmatprep.subr.bf16.mxu0 0
        %601 = vmatpush2.bf16.msra.mxu0 0
        %602 = vmatprep.subr.bf16.mxu0 0
        %603 = vmatpush2.bf16.msra.mxu0 0
        %604 = vmatprep.subr.bf16.mxu0 0
        %605 = vmatpush2.bf16.msra.mxu0 0
        %606 = vmatprep.subr.bf16.mxu0 0
        %607 = vmatpush2.bf16.msra.mxu0 0
        %608 = vmatprep.subr.bf16.mxu0 0
        %609 = vmatpush2.bf16.msra.mxu0 0
        %610 = vmatprep.mubr.bf16.mxu0 0
        %611 = vmatmul.mubr.bf16.gmra.mxu0 %v448
        %v612 = vpop.f32.mrf.mxu0
        %v613 = vadd.f32 %v432, %v612
        %v614 = vpop.f32.mrf.mxu0
        %v615 = vadd.f32 %v436, %v614
        %v616 = vpop.f32.mrf.mxu0
        %v617 = vadd.f32 %v432, %v616
        %v618 = vpop.f32.mrf.mxu0
        %v619 = vadd.f32 %v436, %v618
        %620 = vdwg.mxu0
        %621 = vmatprep.subr.bf16.mxu0 0
        %622 = vmatpush1.bf16.msra.mxu0 %v553
        %623 = vmatprep.subr.bf16.mxu0 0
        %624 = vmatpush1.bf16.msra.mxu0 %v550
        %625 = vmatprep.subr.bf16.mxu0 0
        %626 = vmatpush1.bf16.msra.mxu0 %v547
        %627 = vmatprep.subr.bf16.mxu0 0
        %628 = vmatpush1.bf16.msra.mxu0 %v544
        %629 = vmatprep.subr.bf16.mxu0 0
        %630 = vmatpush1.bf16.msra.mxu0 %v541
        %631 = vmatprep.subr.bf16.mxu0 0
        %632 = vmatpush1.bf16.msra.mxu0 %v538
        %633 = vmatprep.subr.bf16.mxu0 0
        %634 = vmatpush1.bf16.msra.mxu0 %v535
        %635 = vmatprep.subr.bf16.mxu0 0
        %636 = vmatpush1.bf16.msra.mxu0 %v532
        %637 = vmatprep.subr.bf16.mxu0 0
        %638 = vmatpush2.bf16.msra.mxu0 0
        %639 = vmatprep.subr.bf16.mxu0 0
        %640 = vmatpush2.bf16.msra.mxu0 0
        %641 = vmatprep.subr.bf16.mxu0 0
        %642 = vmatpush2.bf16.msra.mxu0 0
        %643 = vmatprep.subr.bf16.mxu0 0
        %644 = vmatpush2.bf16.msra.mxu0 0
        %645 = vmatprep.subr.bf16.mxu0 0
        %646 = vmatpush2.bf16.msra.mxu0 0
        %647 = vmatprep.subr.bf16.mxu0 0
        %648 = vmatpush2.bf16.msra.mxu0 0
        %649 = vmatprep.subr.bf16.mxu0 0
        %650 = vmatpush2.bf16.msra.mxu0 0
        %651 = vmatprep.subr.bf16.mxu0 0
        %652 = vmatpush2.bf16.msra.mxu0 0
        %653 = vmatprep.mubr.bf16.mxu0 0
        %654 = vmatmul.mubr.bf16.gmra.mxu0 %v448
        %v655 = vpop.f32.mrf.mxu0
        %v656 = vadd.f32 %v440, %v655
        %v657 = vpop.f32.mrf.mxu0
        %v658 = vpop.f32.mrf.mxu0
        %v659 = vadd.f32 %v440, %v658
        %v660 = vpop.f32.mrf.mxu0
        %661 = vdwg.mxu0
        %664 = vrot.lane.b32.xlu0 %v613, 96
        %v665 = vpop.permute.xlu0 %664
        %666 = vrot.lane.b32.xlu0 %v617, 96
        %v667 = vpop.permute.xlu0 %666
        %670 = vrot.lane.b32.xlu0 %v613, 64
        %v671 = vpop.permute.xlu0 %670
        %672 = vrot.lane.b32.xlu0 %v617, 64
        %v673 = vpop.permute.xlu0 %672
        %676 = vrot.lane.b32.xlu0 %v613, 32
        %v677 = vpop.permute.xlu0 %676
        %678 = vrot.lane.b32.xlu0 %v617, 32
        %v679 = vpop.permute.xlu0 %678
        %v682 = vcombine.low %v613, %v671
        %v683 = vcombine.high %v613, %v671
        %v685 = vunpack.c.l.s4 1983009808
        %v686 = vunpack.c.0.s8 %v685
        %v687 = vlaneseq
        %v688 = vshrl.u32 %v687, 7
        %v689 = vsub.s32 %v686, %v688
        %v690 = vrot.slane %v682, %v689
        %v692 = vunpack.c.l.s4 1983009808
        %v693 = vunpack.c.0.s8 %v692
        %v694 = vlaneseq
        %v695 = vshrl.u32 %v694, 7
        %v696 = vsub.s32 %v693, %v695
        %v697 = vrot.slane %v683, %v696
        %v698 = vcombine.low %v665, %v677
        %v699 = vcombine.high %v665, %v677
        %v701 = vunpack.c.l.s4 1983009808
        %v702 = vunpack.c.0.s8 %v701
        %v703 = vlaneseq
        %v704 = vshrl.u32 %v703, 7
        %v705 = vsub.s32 %v702, %v704
        %v706 = vrot.slane %v698, %v705
        %v708 = vunpack.c.l.s4 1983009808
        %v709 = vunpack.c.0.s8 %v708
        %v710 = vlaneseq
        %v711 = vshrl.u32 %v710, 7
        %v712 = vsub.s32 %v709, %v711
        %v713 = vrot.slane %v699, %v712
        %v714 = vcombine.low %v690, %v706
        %v715 = vcombine.high %v690, %v706
        %v717 = vunpack.c.l.s4 1934713408
        %v718 = vunpack.c.0.s8 %v717
        %v719 = vlaneseq
        %v720 = vshrl.u32 %v719, 7
        %v721 = vsub.s32 %v718, %v720
        %v722 = vrot.slane %v714, %v721
        %v724 = vunpack.c.l.s4 1934713408
        %v725 = vunpack.c.0.s8 %v724
        %v726 = vlaneseq
        %v727 = vshrl.u32 %v726, 7
        %v728 = vsub.s32 %v725, %v727
        %v729 = vrot.slane %v715, %v728
        %v730 = vcombine.low %v697, %v713
        %v731 = vcombine.high %v697, %v713
        %v733 = vunpack.c.l.s4 1934713408
        %v734 = vunpack.c.0.s8 %v733
        %v735 = vlaneseq
        %v736 = vshrl.u32 %v735, 7
        %v737 = vsub.s32 %v734, %v736
        %v738 = vrot.slane %v730, %v737
        %v740 = vunpack.c.l.s4 1934713408
        %v741 = vunpack.c.0.s8 %v740
        %v742 = vlaneseq
        %v743 = vshrl.u32 %v742, 7
        %v744 = vsub.s32 %v741, %v743
        %v745 = vrot.slane %v731, %v744
        %v746 = vcombine.high %v722, 0.0
        %v747 = vcombine.high %v729, 0.0
        %v748 = vcombine.high %v738, 0.0
        %v749 = vcombine.high %v745, 0.0
        %v750 = vcombine.low %v617, %v673
        %v751 = vcombine.high %v617, %v673
        %v753 = vunpack.c.l.s4 1983009808
        %v754 = vunpack.c.0.s8 %v753
        %v755 = vlaneseq
        %v756 = vshrl.u32 %v755, 7
        %v757 = vsub.s32 %v754, %v756
        %v758 = vrot.slane %v750, %v757
        %v760 = vunpack.c.l.s4 1983009808
        %v761 = vunpack.c.0.s8 %v760
        %v762 = vlaneseq
        %v763 = vshrl.u32 %v762, 7
        %v764 = vsub.s32 %v761, %v763
        %v765 = vrot.slane %v751, %v764
        %v766 = vcombine.low %v667, %v679
        %v767 = vcombine.high %v667, %v679
        %v769 = vunpack.c.l.s4 1983009808
        %v770 = vunpack.c.0.s8 %v769
        %v771 = vlaneseq
        %v772 = vshrl.u32 %v771, 7
        %v773 = vsub.s32 %v770, %v772
        %v774 = vrot.slane %v766, %v773
        %v776 = vunpack.c.l.s4 1983009808
        %v777 = vunpack.c.0.s8 %v776
        %v778 = vlaneseq
        %v779 = vshrl.u32 %v778, 7
        %v780 = vsub.s32 %v777, %v779
        %v781 = vrot.slane %v767, %v780
        %v782 = vcombine.low %v758, %v774
        %v783 = vcombine.high %v758, %v774
        %v785 = vunpack.c.l.s4 1934713408
        %v786 = vunpack.c.0.s8 %v785
        %v787 = vlaneseq
        %v788 = vshrl.u32 %v787, 7
        %v789 = vsub.s32 %v786, %v788
        %v790 = vrot.slane %v782, %v789
        %v792 = vunpack.c.l.s4 1934713408
        %v793 = vunpack.c.0.s8 %v792
        %v794 = vlaneseq
        %v795 = vshrl.u32 %v794, 7
        %v796 = vsub.s32 %v793, %v795
        %v797 = vrot.slane %v783, %v796
        %v798 = vcombine.low %v765, %v781
        %v799 = vcombine.high %v765, %v781
        %v801 = vunpack.c.l.s4 1934713408
        %v802 = vunpack.c.0.s8 %v801
        %v803 = vlaneseq
        %v804 = vshrl.u32 %v803, 7
        %v805 = vsub.s32 %v802, %v804
        %v806 = vrot.slane %v798, %v805
        %v808 = vunpack.c.l.s4 1934713408
        %v809 = vunpack.c.0.s8 %v808
        %v810 = vlaneseq
        %v811 = vshrl.u32 %v810, 7
        %v812 = vsub.s32 %v809, %v811
        %v813 = vrot.slane %v799, %v812
        %v814 = vcombine.high %v790, 0.0
        %v815 = vcombine.high %v797, 0.0
        %v816 = vcombine.high %v806, 0.0
        %v817 = vcombine.high %v813, 0.0
        %v818 = vpack.c.bf16 %v722, %v722
        %v819 = vpack.c.bf16 %v746, %v746
        %v820 = vpack.c.bf16 %v729, %v729
        %v821 = vpack.c.bf16 %v747, %v747
        %v822 = vpack.c.bf16 %v738, %v738
        %v823 = vpack.c.bf16 %v748, %v748
        %v824 = vpack.c.bf16 %v745, %v745
        %v825 = vpack.c.bf16 %v749, %v749
        %v826 = vpack.c.bf16 %v790, %v790
        %v827 = vpack.c.bf16 %v814, %v814
        %v828 = vpack.c.bf16 %v797, %v797
        %v829 = vpack.c.bf16 %v815, %v815
        %v830 = vpack.c.bf16 %v806, %v806
        %v831 = vpack.c.bf16 %v816, %v816
        %v832 = vpack.c.bf16 %v813, %v813
        %v833 = vpack.c.bf16 %v817, %v817
        %v834 = vcombine.low %v818, %v822
        %v836 = vunpack.c.l.s4 1983009808
        %v837 = vunpack.c.0.s8 %v836
        %v838 = vlaneseq
        %v839 = vshrl.u32 %v838, 7
        %v840 = vsub.s32 %v837, %v839
        %v841 = vrot.slane %v834, %v840
        %v842 = vcombine.low %v820, %v824
        %v844 = vunpack.c.l.s4 1983009808
        %v845 = vunpack.c.0.s8 %v844
        %v846 = vlaneseq
        %v847 = vshrl.u32 %v846, 7
        %v848 = vsub.s32 %v845, %v847
        %v849 = vrot.slane %v842, %v848
        %v850 = vcombine.low %v841, %v849
        %v852 = vunpack.c.l.s4 1934713408
        %v853 = vunpack.c.0.s8 %v852
        %v854 = vlaneseq
        %v855 = vshrl.u32 %v854, 7
        %v856 = vsub.s32 %v853, %v855
        %v857 = vrot.slane %v850, %v856
        %v858 = vcombine.high %v857, 0
        %v859 = vcombine.low %v819, %v823
        %v861 = vunpack.c.l.s4 1983009808
        %v862 = vunpack.c.0.s8 %v861
        %v863 = vlaneseq
        %v864 = vshrl.u32 %v863, 7
        %v865 = vsub.s32 %v862, %v864
        %v866 = vrot.slane %v859, %v865
        %v867 = vcombine.low %v821, %v825
        %v869 = vunpack.c.l.s4 1983009808
        %v870 = vunpack.c.0.s8 %v869
        %v871 = vlaneseq
        %v872 = vshrl.u32 %v871, 7
        %v873 = vsub.s32 %v870, %v872
        %v874 = vrot.slane %v867, %v873
        %v875 = vcombine.low %v866, %v874
        %v877 = vunpack.c.l.s4 1934713408
        %v878 = vunpack.c.0.s8 %v877
        %v879 = vlaneseq
        %v880 = vshrl.u32 %v879, 7
        %v881 = vsub.s32 %v878, %v880
        %v882 = vrot.slane %v875, %v881
        %v883 = vcombine.high %v882, 0
        %v884 = vcombine.low %v826, %v830
        %v886 = vunpack.c.l.s4 1983009808
        %v887 = vunpack.c.0.s8 %v886
        %v888 = vlaneseq
        %v889 = vshrl.u32 %v888, 7
        %v890 = vsub.s32 %v887, %v889
        %v891 = vrot.slane %v884, %v890
        %v892 = vcombine.low %v828, %v832
        %v894 = vunpack.c.l.s4 1983009808
        %v895 = vunpack.c.0.s8 %v894
        %v896 = vlaneseq
        %v897 = vshrl.u32 %v896, 7
        %v898 = vsub.s32 %v895, %v897
        %v899 = vrot.slane %v892, %v898
        %v900 = vcombine.low %v891, %v899
        %v902 = vunpack.c.l.s4 1934713408
        %v903 = vunpack.c.0.s8 %v902
        %v904 = vlaneseq
        %v905 = vshrl.u32 %v904, 7
        %v906 = vsub.s32 %v903, %v905
        %v907 = vrot.slane %v900, %v906
        %v908 = vcombine.high %v907, 0
        %v909 = vcombine.low %v827, %v831
        %v911 = vunpack.c.l.s4 1983009808
        %v912 = vunpack.c.0.s8 %v911
        %v913 = vlaneseq
        %v914 = vshrl.u32 %v913, 7
        %v915 = vsub.s32 %v912, %v914
        %v916 = vrot.slane %v909, %v915
        %v917 = vcombine.low %v829, %v833
        %v919 = vunpack.c.l.s4 1983009808
        %v920 = vunpack.c.0.s8 %v919
        %v921 = vlaneseq
        %v922 = vshrl.u32 %v921, 7
        %v923 = vsub.s32 %v920, %v922
        %v924 = vrot.slane %v917, %v923
        %v925 = vcombine.low %v916, %v924
        %v927 = vunpack.c.l.s4 1934713408
        %v928 = vunpack.c.0.s8 %v927
        %v929 = vlaneseq
        %v930 = vshrl.u32 %v929, 7
        %v931 = vsub.s32 %v928, %v930
        %v932 = vrot.slane %v925, %v931
        %v933 = vcombine.high %v932, 0
        %v936 = vpack.i.b16 %v882, %v857
        %v937 = vshrl.u32 %v857, 16
        %v938 = vshrl.u32 %v882, 16
        %v939 = vpack.i.b16 %v938, %v937
        %v942 = vpack.i.b16 %v883, %v858
        %v943 = vshrl.u32 %v858, 16
        %v944 = vshrl.u32 %v883, 16
        %v945 = vpack.i.b16 %v944, %v943
        %v948 = vpack.i.b16 %v932, %v907
        %v949 = vshrl.u32 %v907, 16
        %v950 = vshrl.u32 %v932, 16
        %v951 = vpack.i.b16 %v950, %v949
        %v954 = vpack.i.b16 %v933, %v908
        %v955 = vshrl.u32 %v908, 16
        %v956 = vshrl.u32 %v933, 16
        %v957 = vpack.i.b16 %v956, %v955
        %960 = vrot.lane.b32.xlu0 %v615, 96
        %v961 = vpop.permute.xlu0 %960
        %962 = vrot.lane.b32.xlu0 %v619, 96
        %v963 = vpop.permute.xlu0 %962
        %966 = vrot.lane.b32.xlu0 %v615, 64
        %v967 = vpop.permute.xlu0 %966
        %968 = vrot.lane.b32.xlu0 %v619, 64
        %v969 = vpop.permute.xlu0 %968
        %972 = vrot.lane.b32.xlu0 %v615, 32
        %v973 = vpop.permute.xlu0 %972
        %974 = vrot.lane.b32.xlu0 %v619, 32
        %v975 = vpop.permute.xlu0 %974
        %v978 = vcombine.low %v615, %v967
        %v979 = vcombine.high %v615, %v967
        %v981 = vunpack.c.l.s4 1983009808
        %v982 = vunpack.c.0.s8 %v981
        %v983 = vlaneseq
        %v984 = vshrl.u32 %v983, 7
        %v985 = vsub.s32 %v982, %v984
        %v986 = vrot.slane %v978, %v985
        %v988 = vunpack.c.l.s4 1983009808
        %v989 = vunpack.c.0.s8 %v988
        %v990 = vlaneseq
        %v991 = vshrl.u32 %v990, 7
        %v992 = vsub.s32 %v989, %v991
        %v993 = vrot.slane %v979, %v992
        %v994 = vcombine.low %v961, %v973
        %v995 = vcombine.high %v961, %v973
        %v997 = vunpack.c.l.s4 1983009808
        %v998 = vunpack.c.0.s8 %v997
        %v999 = vlaneseq
        %v1000 = vshrl.u32 %v999, 7
        %v1001 = vsub.s32 %v998, %v1000
        %v1002 = vrot.slane %v994, %v1001
        %v1004 = vunpack.c.l.s4 1983009808
        %v1005 = vunpack.c.0.s8 %v1004
        %v1006 = vlaneseq
        %v1007 = vshrl.u32 %v1006, 7
        %v1008 = vsub.s32 %v1005, %v1007
        %v1009 = vrot.slane %v995, %v1008
        %v1010 = vcombine.low %v986, %v1002
        %v1011 = vcombine.high %v986, %v1002
        %v1013 = vunpack.c.l.s4 1934713408
        %v1014 = vunpack.c.0.s8 %v1013
        %v1015 = vlaneseq
        %v1016 = vshrl.u32 %v1015, 7
        %v1017 = vsub.s32 %v1014, %v1016
        %v1018 = vrot.slane %v1010, %v1017
        %v1020 = vunpack.c.l.s4 1934713408
        %v1021 = vunpack.c.0.s8 %v1020
        %v1022 = vlaneseq
        %v1023 = vshrl.u32 %v1022, 7
        %v1024 = vsub.s32 %v1021, %v1023
        %v1025 = vrot.slane %v1011, %v1024
        %v1026 = vcombine.low %v993, %v1009
        %v1027 = vcombine.high %v993, %v1009
        %v1029 = vunpack.c.l.s4 1934713408
        %v1030 = vunpack.c.0.s8 %v1029
        %v1031 = vlaneseq
        %v1032 = vshrl.u32 %v1031, 7
        %v1033 = vsub.s32 %v1030, %v1032
        %v1034 = vrot.slane %v1026, %v1033
        %v1036 = vunpack.c.l.s4 1934713408
        %v1037 = vunpack.c.0.s8 %v1036
        %v1038 = vlaneseq
        %v1039 = vshrl.u32 %v1038, 7
        %v1040 = vsub.s32 %v1037, %v1039
        %v1041 = vrot.slane %v1027, %v1040
        %v1042 = vcombine.high %v1018, 0.0
        %v1043 = vcombine.high %v1025, 0.0
        %v1044 = vcombine.high %v1034, 0.0
        %v1045 = vcombine.high %v1041, 0.0
        %v1046 = vcombine.low %v619, %v969
        %v1047 = vcombine.high %v619, %v969
        %v1049 = vunpack.c.l.s4 1983009808
        %v1050 = vunpack.c.0.s8 %v1049
        %v1051 = vlaneseq
        %v1052 = vshrl.u32 %v1051, 7
        %v1053 = vsub.s32 %v1050, %v1052
        %v1054 = vrot.slane %v1046, %v1053
        %v1056 = vunpack.c.l.s4 1983009808
        %v1057 = vunpack.c.0.s8 %v1056
        %v1058 = vlaneseq
        %v1059 = vshrl.u32 %v1058, 7
        %v1060 = vsub.s32 %v1057, %v1059
        %v1061 = vrot.slane %v1047, %v1060
        %v1062 = vcombine.low %v963, %v975
        %v1063 = vcombine.high %v963, %v975
        %v1065 = vunpack.c.l.s4 1983009808
        %v1066 = vunpack.c.0.s8 %v1065
        %v1067 = vlaneseq
        %v1068 = vshrl.u32 %v1067, 7
        %v1069 = vsub.s32 %v1066, %v1068
        %v1070 = vrot.slane %v1062, %v1069
        %v1072 = vunpack.c.l.s4 1983009808
        %v1073 = vunpack.c.0.s8 %v1072
        %v1074 = vlaneseq
        %v1075 = vshrl.u32 %v1074, 7
        %v1076 = vsub.s32 %v1073, %v1075
        %v1077 = vrot.slane %v1063, %v1076
        %v1078 = vcombine.low %v1054, %v1070
        %v1079 = vcombine.high %v1054, %v1070
        %v1081 = vunpack.c.l.s4 1934713408
        %v1082 = vunpack.c.0.s8 %v1081
        %v1083 = vlaneseq
        %v1084 = vshrl.u32 %v1083, 7
        %v1085 = vsub.s32 %v1082, %v1084
        %v1086 = vrot.slane %v1078, %v1085
        %v1088 = vunpack.c.l.s4 1934713408
        %v1089 = vunpack.c.0.s8 %v1088
        %v1090 = vlaneseq
        %v1091 = vshrl.u32 %v1090, 7
        %v1092 = vsub.s32 %v1089, %v1091
        %v1093 = vrot.slane %v1079, %v1092
        %v1094 = vcombine.low %v1061, %v1077
        %v1095 = vcombine.high %v1061, %v1077
        %v1097 = vunpack.c.l.s4 1934713408
        %v1098 = vunpack.c.0.s8 %v1097
        %v1099 = vlaneseq
        %v1100 = vshrl.u32 %v1099, 7
        %v1101 = vsub.s32 %v1098, %v1100
        %v1102 = vrot.slane %v1094, %v1101
        %v1104 = vunpack.c.l.s4 1934713408
        %v1105 = vunpack.c.0.s8 %v1104
        %v1106 = vlaneseq
        %v1107 = vshrl.u32 %v1106, 7
        %v1108 = vsub.s32 %v1105, %v1107
        %v1109 = vrot.slane %v1095, %v1108
        %v1110 = vcombine.high %v1086, 0.0
        %v1111 = vcombine.high %v1093, 0.0
        %v1112 = vcombine.high %v1102, 0.0
        %v1113 = vcombine.high %v1109, 0.0
        %v1114 = vpack.c.bf16 %v1018, %v1018
        %v1115 = vpack.c.bf16 %v1042, %v1042
        %v1116 = vpack.c.bf16 %v1025, %v1025
        %v1117 = vpack.c.bf16 %v1043, %v1043
        %v1118 = vpack.c.bf16 %v1034, %v1034
        %v1119 = vpack.c.bf16 %v1044, %v1044
        %v1120 = vpack.c.bf16 %v1041, %v1041
        %v1121 = vpack.c.bf16 %v1045, %v1045
        %v1122 = vpack.c.bf16 %v1086, %v1086
        %v1123 = vpack.c.bf16 %v1110, %v1110
        %v1124 = vpack.c.bf16 %v1093, %v1093
        %v1125 = vpack.c.bf16 %v1111, %v1111
        %v1126 = vpack.c.bf16 %v1102, %v1102
        %v1127 = vpack.c.bf16 %v1112, %v1112
        %v1128 = vpack.c.bf16 %v1109, %v1109
        %v1129 = vpack.c.bf16 %v1113, %v1113
        %v1130 = vcombine.low %v1114, %v1118
        %v1132 = vunpack.c.l.s4 1983009808
        %v1133 = vunpack.c.0.s8 %v1132
        %v1134 = vlaneseq
        %v1135 = vshrl.u32 %v1134, 7
        %v1136 = vsub.s32 %v1133, %v1135
        %v1137 = vrot.slane %v1130, %v1136
        %v1138 = vcombine.low %v1116, %v1120
        %v1140 = vunpack.c.l.s4 1983009808
        %v1141 = vunpack.c.0.s8 %v1140
        %v1142 = vlaneseq
        %v1143 = vshrl.u32 %v1142, 7
        %v1144 = vsub.s32 %v1141, %v1143
        %v1145 = vrot.slane %v1138, %v1144
        %v1146 = vcombine.low %v1137, %v1145
        %v1148 = vunpack.c.l.s4 1934713408
        %v1149 = vunpack.c.0.s8 %v1148
        %v1150 = vlaneseq
        %v1151 = vshrl.u32 %v1150, 7
        %v1152 = vsub.s32 %v1149, %v1151
        %v1153 = vrot.slane %v1146, %v1152
        %v1154 = vcombine.high %v1153, 0
        %v1155 = vcombine.low %v1115, %v1119
        %v1157 = vunpack.c.l.s4 1983009808
        %v1158 = vunpack.c.0.s8 %v1157
        %v1159 = vlaneseq
        %v1160 = vshrl.u32 %v1159, 7
        %v1161 = vsub.s32 %v1158, %v1160
        %v1162 = vrot.slane %v1155, %v1161
        %v1163 = vcombine.low %v1117, %v1121
        %v1165 = vunpack.c.l.s4 1983009808
        %v1166 = vunpack.c.0.s8 %v1165
        %v1167 = vlaneseq
        %v1168 = vshrl.u32 %v1167, 7
        %v1169 = vsub.s32 %v1166, %v1168
        %v1170 = vrot.slane %v1163, %v1169
        %v1171 = vcombine.low %v1162, %v1170
        %v1173 = vunpack.c.l.s4 1934713408
        %v1174 = vunpack.c.0.s8 %v1173
        %v1175 = vlaneseq
        %v1176 = vshrl.u32 %v1175, 7
        %v1177 = vsub.s32 %v1174, %v1176
        %v1178 = vrot.slane %v1171, %v1177
        %v1179 = vcombine.high %v1178, 0
        %v1180 = vcombine.low %v1122, %v1126
        %v1182 = vunpack.c.l.s4 1983009808
        %v1183 = vunpack.c.0.s8 %v1182
        %v1184 = vlaneseq
        %v1185 = vshrl.u32 %v1184, 7
        %v1186 = vsub.s32 %v1183, %v1185
        %v1187 = vrot.slane %v1180, %v1186
        %v1188 = vcombine.low %v1124, %v1128
        %v1190 = vunpack.c.l.s4 1983009808
        %v1191 = vunpack.c.0.s8 %v1190
        %v1192 = vlaneseq
        %v1193 = vshrl.u32 %v1192, 7
        %v1194 = vsub.s32 %v1191, %v1193
        %v1195 = vrot.slane %v1188, %v1194
        %v1196 = vcombine.low %v1187, %v1195
        %v1198 = vunpack.c.l.s4 1934713408
        %v1199 = vunpack.c.0.s8 %v1198
        %v1200 = vlaneseq
        %v1201 = vshrl.u32 %v1200, 7
        %v1202 = vsub.s32 %v1199, %v1201
        %v1203 = vrot.slane %v1196, %v1202
        %v1204 = vcombine.high %v1203, 0
        %v1205 = vcombine.low %v1123, %v1127
        %v1207 = vunpack.c.l.s4 1983009808
        %v1208 = vunpack.c.0.s8 %v1207
        %v1209 = vlaneseq
        %v1210 = vshrl.u32 %v1209, 7
        %v1211 = vsub.s32 %v1208, %v1210
        %v1212 = vrot.slane %v1205, %v1211
        %v1213 = vcombine.low %v1125, %v1129
        %v1215 = vunpack.c.l.s4 1983009808
        %v1216 = vunpack.c.0.s8 %v1215
        %v1217 = vlaneseq
        %v1218 = vshrl.u32 %v1217, 7
        %v1219 = vsub.s32 %v1216, %v1218
        %v1220 = vrot.slane %v1213, %v1219
        %v1221 = vcombine.low %v1212, %v1220
        %v1223 = vunpack.c.l.s4 1934713408
        %v1224 = vunpack.c.0.s8 %v1223
        %v1225 = vlaneseq
        %v1226 = vshrl.u32 %v1225, 7
        %v1227 = vsub.s32 %v1224, %v1226
        %v1228 = vrot.slane %v1221, %v1227
        %v1229 = vcombine.high %v1228, 0
        %v1232 = vpack.i.b16 %v1178, %v1153
        %v1233 = vshrl.u32 %v1153, 16
        %v1234 = vshrl.u32 %v1178, 16
        %v1235 = vpack.i.b16 %v1234, %v1233
        %v1238 = vpack.i.b16 %v1179, %v1154
        %v1239 = vshrl.u32 %v1154, 16
        %v1240 = vshrl.u32 %v1179, 16
        %v1241 = vpack.i.b16 %v1240, %v1239
        %v1244 = vpack.i.b16 %v1228, %v1203
        %v1245 = vshrl.u32 %v1203, 16
        %v1246 = vshrl.u32 %v1228, 16
        %v1247 = vpack.i.b16 %v1246, %v1245
        %v1250 = vpack.i.b16 %v1229, %v1204
        %v1251 = vshrl.u32 %v1204, 16
        %v1252 = vshrl.u32 %v1229, 16
        %v1253 = vpack.i.b16 %v1252, %v1251
        %1256 = vrot.lane.b32.xlu0 %v656, 96
        %v1257 = vpop.permute.xlu0 %1256
        %1258 = vrot.lane.b32.xlu0 %v659, 96
        %v1259 = vpop.permute.xlu0 %1258
        %1262 = vrot.lane.b32.xlu0 %v656, 64
        %v1263 = vpop.permute.xlu0 %1262
        %1264 = vrot.lane.b32.xlu0 %v659, 64
        %v1265 = vpop.permute.xlu0 %1264
        %1268 = vrot.lane.b32.xlu0 %v656, 32
        %v1269 = vpop.permute.xlu0 %1268
        %1270 = vrot.lane.b32.xlu0 %v659, 32
        %v1271 = vpop.permute.xlu0 %1270
        %v1274 = vcombine.low %v656, %v1263
        %v1275 = vcombine.high %v656, %v1263
        %v1277 = vunpack.c.l.s4 1983009808
        %v1278 = vunpack.c.0.s8 %v1277
        %v1279 = vlaneseq
        %v1280 = vshrl.u32 %v1279, 7
        %v1281 = vsub.s32 %v1278, %v1280
        %v1282 = vrot.slane %v1274, %v1281
        %v1284 = vunpack.c.l.s4 1983009808
        %v1285 = vunpack.c.0.s8 %v1284
        %v1286 = vlaneseq
        %v1287 = vshrl.u32 %v1286, 7
        %v1288 = vsub.s32 %v1285, %v1287
        %v1289 = vrot.slane %v1275, %v1288
        %v1290 = vcombine.low %v1257, %v1269
        %v1291 = vcombine.high %v1257, %v1269
        %v1293 = vunpack.c.l.s4 1983009808
        %v1294 = vunpack.c.0.s8 %v1293
        %v1295 = vlaneseq
        %v1296 = vshrl.u32 %v1295, 7
        %v1297 = vsub.s32 %v1294, %v1296
        %v1298 = vrot.slane %v1290, %v1297
        %v1300 = vunpack.c.l.s4 1983009808
        %v1301 = vunpack.c.0.s8 %v1300
        %v1302 = vlaneseq
        %v1303 = vshrl.u32 %v1302, 7
        %v1304 = vsub.s32 %v1301, %v1303
        %v1305 = vrot.slane %v1291, %v1304
        %v1306 = vcombine.low %v1282, %v1298
        %v1307 = vcombine.high %v1282, %v1298
        %v1309 = vunpack.c.l.s4 1934713408
        %v1310 = vunpack.c.0.s8 %v1309
        %v1311 = vlaneseq
        %v1312 = vshrl.u32 %v1311, 7
        %v1313 = vsub.s32 %v1310, %v1312
        %v1314 = vrot.slane %v1306, %v1313
        %v1316 = vunpack.c.l.s4 1934713408
        %v1317 = vunpack.c.0.s8 %v1316
        %v1318 = vlaneseq
        %v1319 = vshrl.u32 %v1318, 7
        %v1320 = vsub.s32 %v1317, %v1319
        %v1321 = vrot.slane %v1307, %v1320
        %v1322 = vcombine.low %v1289, %v1305
        %v1323 = vcombine.high %v1289, %v1305
        %v1325 = vunpack.c.l.s4 1934713408
        %v1326 = vunpack.c.0.s8 %v1325
        %v1327 = vlaneseq
        %v1328 = vshrl.u32 %v1327, 7
        %v1329 = vsub.s32 %v1326, %v1328
        %v1330 = vrot.slane %v1322, %v1329
        %v1332 = vunpack.c.l.s4 1934713408
        %v1333 = vunpack.c.0.s8 %v1332
        %v1334 = vlaneseq
        %v1335 = vshrl.u32 %v1334, 7
        %v1336 = vsub.s32 %v1333, %v1335
        %v1337 = vrot.slane %v1323, %v1336
        %v1338 = vcombine.high %v1314, 0.0
        %v1339 = vcombine.high %v1321, 0.0
        %v1340 = vcombine.high %v1330, 0.0
        %v1341 = vcombine.high %v1337, 0.0
        %v1342 = vcombine.low %v659, %v1265
        %v1343 = vcombine.high %v659, %v1265
        %v1345 = vunpack.c.l.s4 1983009808
        %v1346 = vunpack.c.0.s8 %v1345
        %v1347 = vlaneseq
        %v1348 = vshrl.u32 %v1347, 7
        %v1349 = vsub.s32 %v1346, %v1348
        %v1350 = vrot.slane %v1342, %v1349
        %v1352 = vunpack.c.l.s4 1983009808
        %v1353 = vunpack.c.0.s8 %v1352
        %v1354 = vlaneseq
        %v1355 = vshrl.u32 %v1354, 7
        %v1356 = vsub.s32 %v1353, %v1355
        %v1357 = vrot.slane %v1343, %v1356
        %v1358 = vcombine.low %v1259, %v1271
        %v1359 = vcombine.high %v1259, %v1271
        %v1361 = vunpack.c.l.s4 1983009808
        %v1362 = vunpack.c.0.s8 %v1361
        %v1363 = vlaneseq
        %v1364 = vshrl.u32 %v1363, 7
        %v1365 = vsub.s32 %v1362, %v1364
        %v1366 = vrot.slane %v1358, %v1365
        %v1368 = vunpack.c.l.s4 1983009808
        %v1369 = vunpack.c.0.s8 %v1368
        %v1370 = vlaneseq
        %v1371 = vshrl.u32 %v1370, 7
        %v1372 = vsub.s32 %v1369, %v1371
        %v1373 = vrot.slane %v1359, %v1372
        %v1374 = vcombine.low %v1350, %v1366
        %v1375 = vcombine.high %v1350, %v1366
        %v1377 = vunpack.c.l.s4 1934713408
        %v1378 = vunpack.c.0.s8 %v1377
        %v1379 = vlaneseq
        %v1380 = vshrl.u32 %v1379, 7
        %v1381 = vsub.s32 %v1378, %v1380
        %v1382 = vrot.slane %v1374, %v1381
        %v1384 = vunpack.c.l.s4 1934713408
        %v1385 = vunpack.c.0.s8 %v1384
        %v1386 = vlaneseq
        %v1387 = vshrl.u32 %v1386, 7
        %v1388 = vsub.s32 %v1385, %v1387
        %v1389 = vrot.slane %v1375, %v1388
        %v1390 = vcombine.low %v1357, %v1373
        %v1391 = vcombine.high %v1357, %v1373
        %v1393 = vunpack.c.l.s4 1934713408
        %v1394 = vunpack.c.0.s8 %v1393
        %v1395 = vlaneseq
        %v1396 = vshrl.u32 %v1395, 7
        %v1397 = vsub.s32 %v1394, %v1396
        %v1398 = vrot.slane %v1390, %v1397
        %v1400 = vunpack.c.l.s4 1934713408
        %v1401 = vunpack.c.0.s8 %v1400
        %v1402 = vlaneseq
        %v1403 = vshrl.u32 %v1402, 7
        %v1404 = vsub.s32 %v1401, %v1403
        %v1405 = vrot.slane %v1391, %v1404
        %v1406 = vcombine.high %v1382, 0.0
        %v1407 = vcombine.high %v1389, 0.0
        %v1408 = vcombine.high %v1398, 0.0
        %v1409 = vcombine.high %v1405, 0.0
        %v1410 = vpack.c.bf16 %v1314, %v1314
        %v1411 = vpack.c.bf16 %v1338, %v1338
        %v1412 = vpack.c.bf16 %v1321, %v1321
        %v1413 = vpack.c.bf16 %v1339, %v1339
        %v1414 = vpack.c.bf16 %v1330, %v1330
        %v1415 = vpack.c.bf16 %v1340, %v1340
        %v1416 = vpack.c.bf16 %v1337, %v1337
        %v1417 = vpack.c.bf16 %v1341, %v1341
        %v1418 = vpack.c.bf16 %v1382, %v1382
        %v1419 = vpack.c.bf16 %v1406, %v1406
        %v1420 = vpack.c.bf16 %v1389, %v1389
        %v1421 = vpack.c.bf16 %v1407, %v1407
        %v1422 = vpack.c.bf16 %v1398, %v1398
        %v1423 = vpack.c.bf16 %v1408, %v1408
        %v1424 = vpack.c.bf16 %v1405, %v1405
        %v1425 = vpack.c.bf16 %v1409, %v1409
        %v1426 = vcombine.low %v1410, %v1414
        %v1428 = vunpack.c.l.s4 1983009808
        %v1429 = vunpack.c.0.s8 %v1428
        %v1430 = vlaneseq
        %v1431 = vshrl.u32 %v1430, 7
        %v1432 = vsub.s32 %v1429, %v1431
        %v1433 = vrot.slane %v1426, %v1432
        %v1434 = vcombine.low %v1412, %v1416
        %v1436 = vunpack.c.l.s4 1983009808
        %v1437 = vunpack.c.0.s8 %v1436
        %v1438 = vlaneseq
        %v1439 = vshrl.u32 %v1438, 7
        %v1440 = vsub.s32 %v1437, %v1439
        %v1441 = vrot.slane %v1434, %v1440
        %v1442 = vcombine.low %v1433, %v1441
        %v1444 = vunpack.c.l.s4 1934713408
        %v1445 = vunpack.c.0.s8 %v1444
        %v1446 = vlaneseq
        %v1447 = vshrl.u32 %v1446, 7
        %v1448 = vsub.s32 %v1445, %v1447
        %v1449 = vrot.slane %v1442, %v1448
        %v1450 = vcombine.high %v1449, 0
        %v1451 = vcombine.low %v1411, %v1415
        %v1453 = vunpack.c.l.s4 1983009808
        %v1454 = vunpack.c.0.s8 %v1453
        %v1455 = vlaneseq
        %v1456 = vshrl.u32 %v1455, 7
        %v1457 = vsub.s32 %v1454, %v1456
        %v1458 = vrot.slane %v1451, %v1457
        %v1459 = vcombine.low %v1413, %v1417
        %v1461 = vunpack.c.l.s4 1983009808
        %v1462 = vunpack.c.0.s8 %v1461
        %v1463 = vlaneseq
        %v1464 = vshrl.u32 %v1463, 7
        %v1465 = vsub.s32 %v1462, %v1464
        %v1466 = vrot.slane %v1459, %v1465
        %v1467 = vcombine.low %v1458, %v1466
        %v1469 = vunpack.c.l.s4 1934713408
        %v1470 = vunpack.c.0.s8 %v1469
        %v1471 = vlaneseq
        %v1472 = vshrl.u32 %v1471, 7
        %v1473 = vsub.s32 %v1470, %v1472
        %v1474 = vrot.slane %v1467, %v1473
        %v1475 = vcombine.high %v1474, 0
        %v1476 = vcombine.low %v1418, %v1422
        %v1478 = vunpack.c.l.s4 1983009808
        %v1479 = vunpack.c.0.s8 %v1478
        %v1480 = vlaneseq
        %v1481 = vshrl.u32 %v1480, 7
        %v1482 = vsub.s32 %v1479, %v1481
        %v1483 = vrot.slane %v1476, %v1482
        %v1484 = vcombine.low %v1420, %v1424
        %v1486 = vunpack.c.l.s4 1983009808
        %v1487 = vunpack.c.0.s8 %v1486
        %v1488 = vlaneseq
        %v1489 = vshrl.u32 %v1488, 7
        %v1490 = vsub.s32 %v1487, %v1489
        %v1491 = vrot.slane %v1484, %v1490
        %v1492 = vcombine.low %v1483, %v1491
        %v1494 = vunpack.c.l.s4 1934713408
        %v1495 = vunpack.c.0.s8 %v1494
        %v1496 = vlaneseq
        %v1497 = vshrl.u32 %v1496, 7
        %v1498 = vsub.s32 %v1495, %v1497
        %v1499 = vrot.slane %v1492, %v1498
        %v1500 = vcombine.high %v1499, 0
        %v1501 = vcombine.low %v1419, %v1423
        %v1503 = vunpack.c.l.s4 1983009808
        %v1504 = vunpack.c.0.s8 %v1503
        %v1505 = vlaneseq
        %v1506 = vshrl.u32 %v1505, 7
        %v1507 = vsub.s32 %v1504, %v1506
        %v1508 = vrot.slane %v1501, %v1507
        %v1509 = vcombine.low %v1421, %v1425
        %v1511 = vunpack.c.l.s4 1983009808
        %v1512 = vunpack.c.0.s8 %v1511
        %v1513 = vlaneseq
        %v1514 = vshrl.u32 %v1513, 7
        %v1515 = vsub.s32 %v1512, %v1514
        %v1516 = vrot.slane %v1509, %v1515
        %v1517 = vcombine.low %v1508, %v1516
        %v1519 = vunpack.c.l.s4 1934713408
        %v1520 = vunpack.c.0.s8 %v1519
        %v1521 = vlaneseq
        %v1522 = vshrl.u32 %v1521, 7
        %v1523 = vsub.s32 %v1520, %v1522
        %v1524 = vrot.slane %v1517, %v1523
        %v1525 = vcombine.high %v1524, 0
        %v1528 = vpack.i.b16 %v1474, %v1449
        %v1529 = vshrl.u32 %v1449, 16
        %v1530 = vshrl.u32 %v1474, 16
        %v1531 = vpack.i.b16 %v1530, %v1529
        %v1534 = vpack.i.b16 %v1475, %v1450
        %v1535 = vshrl.u32 %v1450, 16
        %v1536 = vshrl.u32 %v1475, 16
        %v1537 = vpack.i.b16 %v1536, %v1535
        %v1540 = vpack.i.b16 %v1524, %v1499
        %v1541 = vshrl.u32 %v1499, 16
        %v1542 = vshrl.u32 %v1524, 16
        %v1543 = vpack.i.b16 %v1542, %v1541
        %v1546 = vpack.i.b16 %v1525, %v1500
        %v1547 = vshrl.u32 %v1500, 16
        %v1548 = vshrl.u32 %v1525, 16
        %v1549 = vpack.i.b16 %v1548, %v1547
        %vm1550 = vcmask 261120
        %v1552 = vsel %vm1550, %v936, 0
        %v1555 = vsel %vm1550, %v1232, 0
        %1557 = vmatprep.subr.bf16.mxu0 0
        %1558 = vmatpush1.bf16.xpose.msra.mxu0 0
        %1559 = vmatprep.subr.bf16.mxu0 0
        %1560 = vmatpush1.bf16.xpose.msra.mxu0 0
        %1561 = vmatprep.subr.bf16.mxu0 0
        %1562 = vmatpush1.bf16.xpose.msra.mxu0 0
        %1563 = vmatprep.subr.bf16.mxu0 0
        %1564 = vmatpush1.bf16.xpose.msra.mxu0 0
        %1565 = vmatprep.subr.bf16.mxu0 0
        %1566 = vmatpush1.bf16.xpose.msra.mxu0 0
        %1567 = vmatprep.subr.bf16.mxu0 0
        %1568 = vmatpush1.bf16.xpose.msra.mxu0 0
        %1569 = vmatprep.subr.bf16.mxu0 0
        %1570 = vmatpush1.bf16.xpose.msra.mxu0 0
        %1571 = vmatprep.subr.bf16.mxu0 0
        %1572 = vmatpush1.bf16.xpose.msra.mxu0 %v1555
        %1573 = vmatprep.subr.bf16.mxu0 0
        %1574 = vmatpush2.bf16.xpose.msra.mxu0 0
        %1575 = vmatprep.subr.bf16.mxu0 0
        %1576 = vmatpush2.bf16.xpose.msra.mxu0 0
        %1577 = vmatprep.subr.bf16.mxu0 0
        %1578 = vmatpush2.bf16.xpose.msra.mxu0 0
        %1579 = vmatprep.subr.bf16.mxu0 0
        %1580 = vmatpush2.bf16.xpose.msra.mxu0 0
        %1581 = vmatprep.subr.bf16.mxu0 0
        %1582 = vmatpush2.bf16.xpose.msra.mxu0 0
        %1583 = vmatprep.subr.bf16.mxu0 0
        %1584 = vmatpush2.bf16.xpose.msra.mxu0 0
        %1585 = vmatprep.subr.bf16.mxu0 0
        %1586 = vmatpush2.bf16.xpose.msra.mxu0 0
        %1587 = vmatprep.subr.bf16.mxu0 0
        %1588 = vmatpush2.bf16.xpose.msra.mxu0 0
        %1589 = vmatprep.mubr.bf16.mxu0 0
        %1590 = vmatmul.mubr.bf16.gmra.mxu0 %v1552
        %v1591 = vpop.f32.mrf.mxu0
        %v1592 = vadd.f32 0.0, %v1591
        %v1593 = vpop.f32.mrf.mxu0
        %v1594 = vpop.f32.mrf.mxu0
        %v1595 = vpop.f32.mrf.mxu0
        %1596 = vdwg.mxu0
        %v1598 = vsel %vm1550, %v939, 0
        %v1601 = vsel %vm1550, %v1235, 0
        %1603 = vmatprep.subr.bf16.mxu0 0
        %1604 = vmatpush1.bf16.xpose.msra.mxu0 0
        %1605 = vmatprep.subr.bf16.mxu0 0
        %1606 = vmatpush1.bf16.xpose.msra.mxu0 0
        %1607 = vmatprep.subr.bf16.mxu0 0
        %1608 = vmatpush1.bf16.xpose.msra.mxu0 0
        %1609 = vmatprep.subr.bf16.mxu0 0
        %1610 = vmatpush1.bf16.xpose.msra.mxu0 0
        %1611 = vmatprep.subr.bf16.mxu0 0
        %1612 = vmatpush1.bf16.xpose.msra.mxu0 0
        %1613 = vmatprep.subr.bf16.mxu0 0
        %1614 = vmatpush1.bf16.xpose.msra.mxu0 0
        %1615 = vmatprep.subr.bf16.mxu0 0
        %1616 = vmatpush1.bf16.xpose.msra.mxu0 0
        %1617 = vmatprep.subr.bf16.mxu0 0
        %1618 = vmatpush1.bf16.xpose.msra.mxu0 %v1601
        %1619 = vmatprep.subr.bf16.mxu0 0
        %1620 = vmatpush2.bf16.xpose.msra.mxu0 0
        %1621 = vmatprep.subr.bf16.mxu0 0
        %1622 = vmatpush2.bf16.xpose.msra.mxu0 0
        %1623 = vmatprep.subr.bf16.mxu0 0
        %1624 = vmatpush2.bf16.xpose.msra.mxu0 0
        %1625 = vmatprep.subr.bf16.mxu0 0
        %1626 = vmatpush2.bf16.xpose.msra.mxu0 0
        %1627 = vmatprep.subr.bf16.mxu0 0
        %1628 = vmatpush2.bf16.xpose.msra.mxu0 0
        %1629 = vmatprep.subr.bf16.mxu0 0
        %1630 = vmatpush2.bf16.xpose.msra.mxu0 0
        %1631 = vmatprep.subr.bf16.mxu0 0
        %1632 = vmatpush2.bf16.xpose.msra.mxu0 0
        %1633 = vmatprep.subr.bf16.mxu0 0
        %1634 = vmatpush2.bf16.xpose.msra.mxu0 0
        %1635 = vmatprep.mubr.bf16.mxu0 0
        %1636 = vmatmul.mubr.bf16.gmra.mxu0 %v1598
        %v1637 = vpop.f32.mrf.mxu0
        %v1638 = vadd.f32 0.0, %v1637
        %v1639 = vpop.f32.mrf.mxu0
        %v1640 = vpop.f32.mrf.mxu0
        %v1641 = vpop.f32.mrf.mxu0
        %1642 = vdwg.mxu0
        %v1644 = vsel %vm1550, %v942, 0
        %v1647 = vsel %vm1550, %v1238, 0
        %1649 = vmatprep.subr.bf16.mxu0 0
        %1650 = vmatpush1.bf16.xpose.msra.mxu0 0
        %1651 = vmatprep.subr.bf16.mxu0 0
        %1652 = vmatpush1.bf16.xpose.msra.mxu0 0
        %1653 = vmatprep.subr.bf16.mxu0 0
        %1654 = vmatpush1.bf16.xpose.msra.mxu0 0
        %1655 = vmatprep.subr.bf16.mxu0 0
        %1656 = vmatpush1.bf16.xpose.msra.mxu0 0
        %1657 = vmatprep.subr.bf16.mxu0 0
        %1658 = vmatpush1.bf16.xpose.msra.mxu0 0
        %1659 = vmatprep.subr.bf16.mxu0 0
        %1660 = vmatpush1.bf16.xpose.msra.mxu0 0
        %1661 = vmatprep.subr.bf16.mxu0 0
        %1662 = vmatpush1.bf16.xpose.msra.mxu0 0
        %1663 = vmatprep.subr.bf16.mxu0 0
        %1664 = vmatpush1.bf16.xpose.msra.mxu0 %v1647
        %1665 = vmatprep.subr.bf16.mxu0 0
        %1666 = vmatpush2.bf16.xpose.msra.mxu0 0
        %1667 = vmatprep.subr.bf16.mxu0 0
        %1668 = vmatpush2.bf16.xpose.msra.mxu0 0
        %1669 = vmatprep.subr.bf16.mxu0 0
        %1670 = vmatpush2.bf16.xpose.msra.mxu0 0
        %1671 = vmatprep.subr.bf16.mxu0 0
        %1672 = vmatpush2.bf16.xpose.msra.mxu0 0
        %1673 = vmatprep.subr.bf16.mxu0 0
        %1674 = vmatpush2.bf16.xpose.msra.mxu0 0
        %1675 = vmatprep.subr.bf16.mxu0 0
        %1676 = vmatpush2.bf16.xpose.msra.mxu0 0
        %1677 = vmatprep.subr.bf16.mxu0 0
        %1678 = vmatpush2.bf16.xpose.msra.mxu0 0
        %1679 = vmatprep.subr.bf16.mxu0 0
        %1680 = vmatpush2.bf16.xpose.msra.mxu0 0
        %1681 = vmatprep.mubr.bf16.mxu0 0
        %1682 = vmatmul.mubr.bf16.gmra.mxu0 %v1644
        %v1683 = vpop.f32.mrf.mxu0
        %v1684 = vadd.f32 0.0, %v1683
        %v1685 = vpop.f32.mrf.mxu0
        %v1686 = vpop.f32.mrf.mxu0
        %v1687 = vpop.f32.mrf.mxu0
        %1688 = vdwg.mxu0
        %v1690 = vsel %vm1550, %v945, 0
        %v1693 = vsel %vm1550, %v1241, 0
        %1695 = vmatprep.subr.bf16.mxu0 0
        %1696 = vmatpush1.bf16.xpose.msra.mxu0 0
        %1697 = vmatprep.subr.bf16.mxu0 0
        %1698 = vmatpush1.bf16.xpose.msra.mxu0 0
        %1699 = vmatprep.subr.bf16.mxu0 0
        %1700 = vmatpush1.bf16.xpose.msra.mxu0 0
        %1701 = vmatprep.subr.bf16.mxu0 0
        %1702 = vmatpush1.bf16.xpose.msra.mxu0 0
        %1703 = vmatprep.subr.bf16.mxu0 0
        %1704 = vmatpush1.bf16.xpose.msra.mxu0 0
        %1705 = vmatprep.subr.bf16.mxu0 0
        %1706 = vmatpush1.bf16.xpose.msra.mxu0 0
        %1707 = vmatprep.subr.bf16.mxu0 0
        %1708 = vmatpush1.bf16.xpose.msra.mxu0 0
        %1709 = vmatprep.subr.bf16.mxu0 0
        %1710 = vmatpush1.bf16.xpose.msra.mxu0 %v1693
        %1711 = vmatprep.subr.bf16.mxu0 0
        %1712 = vmatpush2.bf16.xpose.msra.mxu0 0
        %1713 = vmatprep.subr.bf16.mxu0 0
        %1714 = vmatpush2.bf16.xpose.msra.mxu0 0
        %1715 = vmatprep.subr.bf16.mxu0 0
        %1716 = vmatpush2.bf16.xpose.msra.mxu0 0
        %1717 = vmatprep.subr.bf16.mxu0 0
        %1718 = vmatpush2.bf16.xpose.msra.mxu0 0
        %1719 = vmatprep.subr.bf16.mxu0 0
        %1720 = vmatpush2.bf16.xpose.msra.mxu0 0
        %1721 = vmatprep.subr.bf16.mxu0 0
        %1722 = vmatpush2.bf16.xpose.msra.mxu0 0
        %1723 = vmatprep.subr.bf16.mxu0 0
        %1724 = vmatpush2.bf16.xpose.msra.mxu0 0
        %1725 = vmatprep.subr.bf16.mxu0 0
        %1726 = vmatpush2.bf16.xpose.msra.mxu0 0
        %1727 = vmatprep.mubr.bf16.mxu0 0
        %1728 = vmatmul.mubr.bf16.gmra.mxu0 %v1690
        %v1729 = vpop.f32.mrf.mxu0
        %v1730 = vadd.f32 0.0, %v1729
        %v1731 = vpop.f32.mrf.mxu0
        %v1732 = vpop.f32.mrf.mxu0
        %v1733 = vpop.f32.mrf.mxu0
        %1734 = vdwg.mxu0
        %v1736 = vsel %vm1550, %v948, 0
        %v1739 = vsel %vm1550, %v1244, 0
        %1741 = vmatprep.subr.bf16.mxu0 0
        %1742 = vmatpush1.bf16.xpose.msra.mxu0 0
        %1743 = vmatprep.subr.bf16.mxu0 0
        %1744 = vmatpush1.bf16.xpose.msra.mxu0 0
        %1745 = vmatprep.subr.bf16.mxu0 0
        %1746 = vmatpush1.bf16.xpose.msra.mxu0 0
        %1747 = vmatprep.subr.bf16.mxu0 0
        %1748 = vmatpush1.bf16.xpose.msra.mxu0 0
        %1749 = vmatprep.subr.bf16.mxu0 0
        %1750 = vmatpush1.bf16.xpose.msra.mxu0 0
        %1751 = vmatprep.subr.bf16.mxu0 0
        %1752 = vmatpush1.bf16.xpose.msra.mxu0 0
        %1753 = vmatprep.subr.bf16.mxu0 0
        %1754 = vmatpush1.bf16.xpose.msra.mxu0 0
        %1755 = vmatprep.subr.bf16.mxu0 0
        %1756 = vmatpush1.bf16.xpose.msra.mxu0 %v1739
        %1757 = vmatprep.subr.bf16.mxu0 0
        %1758 = vmatpush2.bf16.xpose.msra.mxu0 0
        %1759 = vmatprep.subr.bf16.mxu0 0
        %1760 = vmatpush2.bf16.xpose.msra.mxu0 0
        %1761 = vmatprep.subr.bf16.mxu0 0
        %1762 = vmatpush2.bf16.xpose.msra.mxu0 0
        %1763 = vmatprep.subr.bf16.mxu0 0
        %1764 = vmatpush2.bf16.xpose.msra.mxu0 0
        %1765 = vmatprep.subr.bf16.mxu0 0
        %1766 = vmatpush2.bf16.xpose.msra.mxu0 0
        %1767 = vmatprep.subr.bf16.mxu0 0
        %1768 = vmatpush2.bf16.xpose.msra.mxu0 0
        %1769 = vmatprep.subr.bf16.mxu0 0
        %1770 = vmatpush2.bf16.xpose.msra.mxu0 0
        %1771 = vmatprep.subr.bf16.mxu0 0
        %1772 = vmatpush2.bf16.xpose.msra.mxu0 0
        %1773 = vmatprep.mubr.bf16.mxu0 0
        %1774 = vmatmul.mubr.bf16.gmra.mxu0 %v1736
        %v1775 = vpop.f32.mrf.mxu0
        %v1776 = vadd.f32 0.0, %v1775
        %v1777 = vpop.f32.mrf.mxu0
        %v1778 = vpop.f32.mrf.mxu0
        %v1779 = vpop.f32.mrf.mxu0
        %1780 = vdwg.mxu0
        %v1782 = vsel %vm1550, %v951, 0
        %v1785 = vsel %vm1550, %v1247, 0
        %1787 = vmatprep.subr.bf16.mxu0 0
        %1788 = vmatpush1.bf16.xpose.msra.mxu0 0
        %1789 = vmatprep.subr.bf16.mxu0 0
        %1790 = vmatpush1.bf16.xpose.msra.mxu0 0
        %1791 = vmatprep.subr.bf16.mxu0 0
        %1792 = vmatpush1.bf16.xpose.msra.mxu0 0
        %1793 = vmatprep.subr.bf16.mxu0 0
        %1794 = vmatpush1.bf16.xpose.msra.mxu0 0
        %1795 = vmatprep.subr.bf16.mxu0 0
        %1796 = vmatpush1.bf16.xpose.msra.mxu0 0
        %1797 = vmatprep.subr.bf16.mxu0 0
        %1798 = vmatpush1.bf16.xpose.msra.mxu0 0
        %1799 = vmatprep.subr.bf16.mxu0 0
        %1800 = vmatpush1.bf16.xpose.msra.mxu0 0
        %1801 = vmatprep.subr.bf16.mxu0 0
        %1802 = vmatpush1.bf16.xpose.msra.mxu0 %v1785
        %1803 = vmatprep.subr.bf16.mxu0 0
        %1804 = vmatpush2.bf16.xpose.msra.mxu0 0
        %1805 = vmatprep.subr.bf16.mxu0 0
        %1806 = vmatpush2.bf16.xpose.msra.mxu0 0
        %1807 = vmatprep.subr.bf16.mxu0 0
        %1808 = vmatpush2.bf16.xpose.msra.mxu0 0
        %1809 = vmatprep.subr.bf16.mxu0 0
        %1810 = vmatpush2.bf16.xpose.msra.mxu0 0
        %1811 = vmatprep.subr.bf16.mxu0 0
        %1812 = vmatpush2.bf16.xpose.msra.mxu0 0
        %1813 = vmatprep.subr.bf16.mxu0 0
        %1814 = vmatpush2.bf16.xpose.msra.mxu0 0
        %1815 = vmatprep.subr.bf16.mxu0 0
        %1816 = vmatpush2.bf16.xpose.msra.mxu0 0
        %1817 = vmatprep.subr.bf16.mxu0 0
        %1818 = vmatpush2.bf16.xpose.msra.mxu0 0
        %1819 = vmatprep.mubr.bf16.mxu0 0
        %1820 = vmatmul.mubr.bf16.gmra.mxu0 %v1782
        %v1821 = vpop.f32.mrf.mxu0
        %v1822 = vadd.f32 0.0, %v1821
        %v1823 = vpop.f32.mrf.mxu0
        %v1824 = vpop.f32.mrf.mxu0
        %v1825 = vpop.f32.mrf.mxu0
        %1826 = vdwg.mxu0
        %v1828 = vsel %vm1550, %v954, 0
        %v1831 = vsel %vm1550, %v1250, 0
        %1833 = vmatprep.subr.bf16.mxu0 0
        %1834 = vmatpush1.bf16.xpose.msra.mxu0 0
        %1835 = vmatprep.subr.bf16.mxu0 0
        %1836 = vmatpush1.bf16.xpose.msra.mxu0 0
        %1837 = vmatprep.subr.bf16.mxu0 0
        %1838 = vmatpush1.bf16.xpose.msra.mxu0 0
        %1839 = vmatprep.subr.bf16.mxu0 0
        %1840 = vmatpush1.bf16.xpose.msra.mxu0 0
        %1841 = vmatprep.subr.bf16.mxu0 0
        %1842 = vmatpush1.bf16.xpose.msra.mxu0 0
        %1843 = vmatprep.subr.bf16.mxu0 0
        %1844 = vmatpush1.bf16.xpose.msra.mxu0 0
        %1845 = vmatprep.subr.bf16.mxu0 0
        %1846 = vmatpush1.bf16.xpose.msra.mxu0 0
        %1847 = vmatprep.subr.bf16.mxu0 0
        %1848 = vmatpush1.bf16.xpose.msra.mxu0 %v1831
        %1849 = vmatprep.subr.bf16.mxu0 0
        %1850 = vmatpush2.bf16.xpose.msra.mxu0 0
        %1851 = vmatprep.subr.bf16.mxu0 0
        %1852 = vmatpush2.bf16.xpose.msra.mxu0 0
        %1853 = vmatprep.subr.bf16.mxu0 0
        %1854 = vmatpush2.bf16.xpose.msra.mxu0 0
        %1855 = vmatprep.subr.bf16.mxu0 0
        %1856 = vmatpush2.bf16.xpose.msra.mxu0 0
        %1857 = vmatprep.subr.bf16.mxu0 0
        %1858 = vmatpush2.bf16.xpose.msra.mxu0 0
        %1859 = vmatprep.subr.bf16.mxu0 0
        %1860 = vmatpush2.bf16.xpose.msra.mxu0 0
        %1861 = vmatprep.subr.bf16.mxu0 0
        %1862 = vmatpush2.bf16.xpose.msra.mxu0 0
        %1863 = vmatprep.subr.bf16.mxu0 0
        %1864 = vmatpush2.bf16.xpose.msra.mxu0 0
        %1865 = vmatprep.mubr.bf16.mxu0 0
        %1866 = vmatmul.mubr.bf16.gmra.mxu0 %v1828
        %v1867 = vpop.f32.mrf.mxu0
        %v1868 = vadd.f32 0.0, %v1867
        %v1869 = vpop.f32.mrf.mxu0
        %v1870 = vpop.f32.mrf.mxu0
        %v1871 = vpop.f32.mrf.mxu0
        %1872 = vdwg.mxu0
        %v1874 = vsel %vm1550, %v957, 0
        %v1877 = vsel %vm1550, %v1253, 0
        %1879 = vmatprep.subr.bf16.mxu0 0
        %1880 = vmatpush1.bf16.xpose.msra.mxu0 0
        %1881 = vmatprep.subr.bf16.mxu0 0
        %1882 = vmatpush1.bf16.xpose.msra.mxu0 0
        %1883 = vmatprep.subr.bf16.mxu0 0
        %1884 = vmatpush1.bf16.xpose.msra.mxu0 0
        %1885 = vmatprep.subr.bf16.mxu0 0
        %1886 = vmatpush1.bf16.xpose.msra.mxu0 0
        %1887 = vmatprep.subr.bf16.mxu0 0
        %1888 = vmatpush1.bf16.xpose.msra.mxu0 0
        %1889 = vmatprep.subr.bf16.mxu0 0
        %1890 = vmatpush1.bf16.xpose.msra.mxu0 0
        %1891 = vmatprep.subr.bf16.mxu0 0
        %1892 = vmatpush1.bf16.xpose.msra.mxu0 0
        %1893 = vmatprep.subr.bf16.mxu0 0
        %1894 = vmatpush1.bf16.xpose.msra.mxu0 %v1877
        %1895 = vmatprep.subr.bf16.mxu0 0
        %1896 = vmatpush2.bf16.xpose.msra.mxu0 0
        %1897 = vmatprep.subr.bf16.mxu0 0
        %1898 = vmatpush2.bf16.xpose.msra.mxu0 0
        %1899 = vmatprep.subr.bf16.mxu0 0
        %1900 = vmatpush2.bf16.xpose.msra.mxu0 0
        %1901 = vmatprep.subr.bf16.mxu0 0
        %1902 = vmatpush2.bf16.xpose.msra.mxu0 0
        %1903 = vmatprep.subr.bf16.mxu0 0
        %1904 = vmatpush2.bf16.xpose.msra.mxu0 0
        %1905 = vmatprep.subr.bf16.mxu0 0
        %1906 = vmatpush2.bf16.xpose.msra.mxu0 0
        %1907 = vmatprep.subr.bf16.mxu0 0
        %1908 = vmatpush2.bf16.xpose.msra.mxu0 0
        %1909 = vmatprep.subr.bf16.mxu0 0
        %1910 = vmatpush2.bf16.xpose.msra.mxu0 0
        %1911 = vmatprep.mubr.bf16.mxu0 0
        %1912 = vmatmul.mubr.bf16.gmra.mxu0 %v1874
        %v1913 = vpop.f32.mrf.mxu0
        %v1914 = vadd.f32 0.0, %v1913
        %v1915 = vpop.f32.mrf.mxu0
        %v1916 = vpop.f32.mrf.mxu0
        %v1917 = vpop.f32.mrf.mxu0
        %1918 = vdwg.mxu0
        %vm1919 = vcmask 64512
        %v1920 = vsel %vm1919, %v1592, -inf
        %1921 = vmax.xlane.f32.xlu0 %v1920
        %v1922 = vpop.xlane.xlu0 %1921
        %v1923 = vsel %vm1919, %v1638, -inf
        %1924 = vmax.xlane.f32.xlu0 %v1923
        %v1925 = vpop.xlane.xlu0 %1924
        %v1926 = vsel %vm1919, %v1684, -inf
        %1927 = vmax.xlane.f32.xlu0 %v1926
        %v1928 = vpop.xlane.xlu0 %1927
        %v1929 = vsel %vm1919, %v1730, -inf
        %1930 = vmax.xlane.f32.xlu0 %v1929
        %v1931 = vpop.xlane.xlu0 %1930
        %v1932 = vsel %vm1919, %v1776, -inf
        %1933 = vmax.xlane.f32.xlu0 %v1932
        %v1934 = vpop.xlane.xlu0 %1933
        %v1935 = vsel %vm1919, %v1822, -inf
        %1936 = vmax.xlane.f32.xlu0 %v1935
        %v1937 = vpop.xlane.xlu0 %1936
        %v1938 = vsel %vm1919, %v1868, -inf
        %1939 = vmax.xlane.f32.xlu0 %v1938
        %v1940 = vpop.xlane.xlu0 %1939
        %v1941 = vsel %vm1919, %v1914, -inf
        %1942 = vmax.xlane.f32.xlu0 %v1941
        %v1943 = vpop.xlane.xlu0 %1942
        %v1944 = vsub.f32 %v1592, %v1922
        %v1945 = vsub.f32 %v1638, %v1925
        %v1946 = vsub.f32 %v1684, %v1928
        %v1947 = vsub.f32 %v1730, %v1931
        %v1948 = vsub.f32 %v1776, %v1934
        %v1949 = vsub.f32 %v1822, %v1937
        %v1950 = vsub.f32 %v1868, %v1940
        %v1951 = vsub.f32 %v1914, %v1943
        %v1952 = vmul.f32 %v1944, 1.442695
        %v1953 = vpow.pop %v1952
        %v1954 = vmul.f32 %v1945, 1.442695
        %v1955 = vpow.pop %v1954
        %v1956 = vmul.f32 %v1946, 1.442695
        %v1957 = vpow.pop %v1956
        %v1958 = vmul.f32 %v1947, 1.442695
        %v1959 = vpow.pop %v1958
        %v1960 = vmul.f32 %v1948, 1.442695
        %v1961 = vpow.pop %v1960
        %v1962 = vmul.f32 %v1949, 1.442695
        %v1963 = vpow.pop %v1962
        %v1964 = vmul.f32 %v1950, 1.442695
        %v1965 = vpow.pop %v1964
        %v1966 = vmul.f32 %v1951, 1.442695
        %v1967 = vpow.pop %v1966
        %v1968 = vsel %vm1919, %v1953, 0.0
        %1969 = vadd.xlane.f32.xlu0 %v1968
        %v1970 = vpop.xlane.xlu0 %1969
        %v1971 = vsel %vm1919, %v1955, 0.0
        %1972 = vadd.xlane.f32.xlu0 %v1971
        %v1973 = vpop.xlane.xlu0 %1972
        %v1974 = vsel %vm1919, %v1957, 0.0
        %1975 = vadd.xlane.f32.xlu0 %v1974
        %v1976 = vpop.xlane.xlu0 %1975
        %v1977 = vsel %vm1919, %v1959, 0.0
        %1978 = vadd.xlane.f32.xlu0 %v1977
        %v1979 = vpop.xlane.xlu0 %1978
        %v1980 = vsel %vm1919, %v1961, 0.0
        %1981 = vadd.xlane.f32.xlu0 %v1980
        %v1982 = vpop.xlane.xlu0 %1981
        %v1983 = vsel %vm1919, %v1963, 0.0
        %1984 = vadd.xlane.f32.xlu0 %v1983
        %v1985 = vpop.xlane.xlu0 %1984
        %v1986 = vsel %vm1919, %v1965, 0.0
        %1987 = vadd.xlane.f32.xlu0 %v1986
        %v1988 = vpop.xlane.xlu0 %1987
        %v1989 = vsel %vm1919, %v1967, 0.0
        %1990 = vadd.xlane.f32.xlu0 %v1989
        %v1991 = vpop.xlane.xlu0 %1990
        %v1992 = vrcp.pop %v1970
        %v1993 = vrcp.pop %v1973
        %v1994 = vrcp.pop %v1976
        %v1995 = vrcp.pop %v1979
        %v1996 = vrcp.pop %v1982
        %v1997 = vrcp.pop %v1985
        %v1998 = vrcp.pop %v1988
        %v1999 = vrcp.pop %v1991
        %v2000 = vmul.f32 %v1953, %v1992
        %v2001 = vmul.f32 %v1955, %v1993
        %v2002 = vmul.f32 %v1957, %v1994
        %v2003 = vmul.f32 %v1959, %v1995
        %v2004 = vmul.f32 %v1961, %v1996
        %v2005 = vmul.f32 %v1963, %v1997
        %v2006 = vmul.f32 %v1965, %v1998
        %v2007 = vmul.f32 %v1967, %v1999
        %v2008 = vpack.c.bf16 %v2000, %v2000
        %v2009 = vpack.c.bf16 %v2001, %v2001
        %v2010 = vpack.c.bf16 %v2002, %v2002
        %v2011 = vpack.c.bf16 %v2003, %v2003
        %v2012 = vpack.c.bf16 %v2004, %v2004
        %v2013 = vpack.c.bf16 %v2005, %v2005
        %v2014 = vpack.c.bf16 %v2006, %v2006
        %v2015 = vpack.c.bf16 %v2007, %v2007
        %v2017 = vsel %vm1919, %v2008, 0
        %vm2019 = vcmask 1043456
        %v2021 = vsel %vm2019, %v1528, 0
        %2023 = vmatprep.subr.bf16.mxu0 0
        %2024 = vmatpush1.bf16.msra.mxu0 0
        %2025 = vmatprep.subr.bf16.mxu0 0
        %2026 = vmatpush1.bf16.msra.mxu0 0
        %2027 = vmatprep.subr.bf16.mxu0 0
        %2028 = vmatpush1.bf16.msra.mxu0 0
        %2029 = vmatprep.subr.bf16.mxu0 0
        %2030 = vmatpush1.bf16.msra.mxu0 0
        %2031 = vmatprep.subr.bf16.mxu0 0
        %2032 = vmatpush1.bf16.msra.mxu0 0
        %2033 = vmatprep.subr.bf16.mxu0 0
        %2034 = vmatpush1.bf16.msra.mxu0 0
        %2035 = vmatprep.subr.bf16.mxu0 0
        %2036 = vmatpush1.bf16.msra.mxu0 0
        %2037 = vmatprep.subr.bf16.mxu0 0
        %2038 = vmatpush1.bf16.msra.mxu0 %v2021
        %2039 = vmatprep.subr.bf16.mxu0 0
        %2040 = vmatpush2.bf16.msra.mxu0 0
        %2041 = vmatprep.subr.bf16.mxu0 0
        %2042 = vmatpush2.bf16.msra.mxu0 0
        %2043 = vmatprep.subr.bf16.mxu0 0
        %2044 = vmatpush2.bf16.msra.mxu0 0
        %2045 = vmatprep.subr.bf16.mxu0 0
        %2046 = vmatpush2.bf16.msra.mxu0 0
        %2047 = vmatprep.subr.bf16.mxu0 0
        %2048 = vmatpush2.bf16.msra.mxu0 0
        %2049 = vmatprep.subr.bf16.mxu0 0
        %2050 = vmatpush2.bf16.msra.mxu0 0
        %2051 = vmatprep.subr.bf16.mxu0 0
        %2052 = vmatpush2.bf16.msra.mxu0 0
        %2053 = vmatprep.subr.bf16.mxu0 0
        %2054 = vmatpush2.bf16.msra.mxu0 0
        %2055 = vmatprep.mubr.bf16.mxu0 0
        %2056 = vmatmul.mubr.bf16.gmra.mxu0 %v2017
        %v2057 = vpop.f32.mrf.mxu0
        %v2058 = vadd.f32 0.0, %v2057
        %v2059 = vpop.f32.mrf.mxu0
        %v2060 = vpop.f32.mrf.mxu0
        %v2061 = vpop.f32.mrf.mxu0
        %2062 = vdwg.mxu0
        %v2064 = vsel %vm1919, %v2009, 0
        %v2067 = vsel %vm2019, %v1531, 0
        %2069 = vmatprep.subr.bf16.mxu0 0
        %2070 = vmatpush1.bf16.msra.mxu0 0
        %2071 = vmatprep.subr.bf16.mxu0 0
        %2072 = vmatpush1.bf16.msra.mxu0 0
        %2073 = vmatprep.subr.bf16.mxu0 0
        %2074 = vmatpush1.bf16.msra.mxu0 0
        %2075 = vmatprep.subr.bf16.mxu0 0
        %2076 = vmatpush1.bf16.msra.mxu0 0
        %2077 = vmatprep.subr.bf16.mxu0 0
        %2078 = vmatpush1.bf16.msra.mxu0 0
        %2079 = vmatprep.subr.bf16.mxu0 0
        %2080 = vmatpush1.bf16.msra.mxu0 0
        %2081 = vmatprep.subr.bf16.mxu0 0
        %2082 = vmatpush1.bf16.msra.mxu0 0
        %2083 = vmatprep.subr.bf16.mxu0 0
        %2084 = vmatpush1.bf16.msra.mxu0 %v2067
        %2085 = vmatprep.subr.bf16.mxu0 0
        %2086 = vmatpush2.bf16.msra.mxu0 0
        %2087 = vmatprep.subr.bf16.mxu0 0
        %2088 = vmatpush2.bf16.msra.mxu0 0
        %2089 = vmatprep.subr.bf16.mxu0 0
        %2090 = vmatpush2.bf16.msra.mxu0 0
        %2091 = vmatprep.subr.bf16.mxu0 0
        %2092 = vmatpush2.bf16.msra.mxu0 0
        %2093 = vmatprep.subr.bf16.mxu0 0
        %2094 = vmatpush2.bf16.msra.mxu0 0
        %2095 = vmatprep.subr.bf16.mxu0 0
        %2096 = vmatpush2.bf16.msra.mxu0 0
        %2097 = vmatprep.subr.bf16.mxu0 0
        %2098 = vmatpush2.bf16.msra.mxu0 0
        %2099 = vmatprep.subr.bf16.mxu0 0
        %2100 = vmatpush2.bf16.msra.mxu0 0
        %2101 = vmatprep.mubr.bf16.mxu0 0
        %2102 = vmatmul.mubr.bf16.gmra.mxu0 %v2064
        %v2103 = vpop.f32.mrf.mxu0
        %v2104 = vadd.f32 0.0, %v2103
        %v2105 = vpop.f32.mrf.mxu0
        %v2106 = vpop.f32.mrf.mxu0
        %v2107 = vpop.f32.mrf.mxu0
        %2108 = vdwg.mxu0
        %v2110 = vsel %vm1919, %v2010, 0
        %v2113 = vsel %vm2019, %v1534, 0
        %2115 = vmatprep.subr.bf16.mxu0 0
        %2116 = vmatpush1.bf16.msra.mxu0 0
        %2117 = vmatprep.subr.bf16.mxu0 0
        %2118 = vmatpush1.bf16.msra.mxu0 0
        %2119 = vmatprep.subr.bf16.mxu0 0
        %2120 = vmatpush1.bf16.msra.mxu0 0
        %2121 = vmatprep.subr.bf16.mxu0 0
        %2122 = vmatpush1.bf16.msra.mxu0 0
        %2123 = vmatprep.subr.bf16.mxu0 0
        %2124 = vmatpush1.bf16.msra.mxu0 0
        %2125 = vmatprep.subr.bf16.mxu0 0
        %2126 = vmatpush1.bf16.msra.mxu0 0
        %2127 = vmatprep.subr.bf16.mxu0 0
        %2128 = vmatpush1.bf16.msra.mxu0 0
        %2129 = vmatprep.subr.bf16.mxu0 0
        %2130 = vmatpush1.bf16.msra.mxu0 %v2113
        %2131 = vmatprep.subr.bf16.mxu0 0
        %2132 = vmatpush2.bf16.msra.mxu0 0
        %2133 = vmatprep.subr.bf16.mxu0 0
        %2134 = vmatpush2.bf16.msra.mxu0 0
        %2135 = vmatprep.subr.bf16.mxu0 0
        %2136 = vmatpush2.bf16.msra.mxu0 0
        %2137 = vmatprep.subr.bf16.mxu0 0
        %2138 = vmatpush2.bf16.msra.mxu0 0
        %2139 = vmatprep.subr.bf16.mxu0 0
        %2140 = vmatpush2.bf16.msra.mxu0 0
        %2141 = vmatprep.subr.bf16.mxu0 0
        %2142 = vmatpush2.bf16.msra.mxu0 0
        %2143 = vmatprep.subr.bf16.mxu0 0
        %2144 = vmatpush2.bf16.msra.mxu0 0
        %2145 = vmatprep.subr.bf16.mxu0 0
        %2146 = vmatpush2.bf16.msra.mxu0 0
        %2147 = vmatprep.mubr.bf16.mxu0 0
        %2148 = vmatmul.mubr.bf16.gmra.mxu0 %v2110
        %v2149 = vpop.f32.mrf.mxu0
        %v2150 = vadd.f32 0.0, %v2149
        %v2151 = vpop.f32.mrf.mxu0
        %v2152 = vpop.f32.mrf.mxu0
        %v2153 = vpop.f32.mrf.mxu0
        %2154 = vdwg.mxu0
        %v2156 = vsel %vm1919, %v2011, 0
        %v2159 = vsel %vm2019, %v1537, 0
        %2161 = vmatprep.subr.bf16.mxu0 0
        %2162 = vmatpush1.bf16.msra.mxu0 0
        %2163 = vmatprep.subr.bf16.mxu0 0
        %2164 = vmatpush1.bf16.msra.mxu0 0
        %2165 = vmatprep.subr.bf16.mxu0 0
        %2166 = vmatpush1.bf16.msra.mxu0 0
        %2167 = vmatprep.subr.bf16.mxu0 0
        %2168 = vmatpush1.bf16.msra.mxu0 0
        %2169 = vmatprep.subr.bf16.mxu0 0
        %2170 = vmatpush1.bf16.msra.mxu0 0
        %2171 = vmatprep.subr.bf16.mxu0 0
        %2172 = vmatpush1.bf16.msra.mxu0 0
        %2173 = vmatprep.subr.bf16.mxu0 0
        %2174 = vmatpush1.bf16.msra.mxu0 0
        %2175 = vmatprep.subr.bf16.mxu0 0
        %2176 = vmatpush1.bf16.msra.mxu0 %v2159
        %2177 = vmatprep.subr.bf16.mxu0 0
        %2178 = vmatpush2.bf16.msra.mxu0 0
        %2179 = vmatprep.subr.bf16.mxu0 0
        %2180 = vmatpush2.bf16.msra.mxu0 0
        %2181 = vmatprep.subr.bf16.mxu0 0
        %2182 = vmatpush2.bf16.msra.mxu0 0
        %2183 = vmatprep.subr.bf16.mxu0 0
        %2184 = vmatpush2.bf16.msra.mxu0 0
        %2185 = vmatprep.subr.bf16.mxu0 0
        %2186 = vmatpush2.bf16.msra.mxu0 0
        %2187 = vmatprep.subr.bf16.mxu0 0
        %2188 = vmatpush2.bf16.msra.mxu0 0
        %2189 = vmatprep.subr.bf16.mxu0 0
        %2190 = vmatpush2.bf16.msra.mxu0 0
        %2191 = vmatprep.subr.bf16.mxu0 0
        %2192 = vmatpush2.bf16.msra.mxu0 0
        %2193 = vmatprep.mubr.bf16.mxu0 0
        %2194 = vmatmul.mubr.bf16.gmra.mxu0 %v2156
        %v2195 = vpop.f32.mrf.mxu0
        %v2196 = vadd.f32 0.0, %v2195
        %v2197 = vpop.f32.mrf.mxu0
        %v2198 = vpop.f32.mrf.mxu0
        %v2199 = vpop.f32.mrf.mxu0
        %2200 = vdwg.mxu0
        %v2202 = vsel %vm1919, %v2012, 0
        %v2205 = vsel %vm2019, %v1540, 0
        %2207 = vmatprep.subr.bf16.mxu0 0
        %2208 = vmatpush1.bf16.msra.mxu0 0
        %2209 = vmatprep.subr.bf16.mxu0 0
        %2210 = vmatpush1.bf16.msra.mxu0 0
        %2211 = vmatprep.subr.bf16.mxu0 0
        %2212 = vmatpush1.bf16.msra.mxu0 0
        %2213 = vmatprep.subr.bf16.mxu0 0
        %2214 = vmatpush1.bf16.msra.mxu0 0
        %2215 = vmatprep.subr.bf16.mxu0 0
        %2216 = vmatpush1.bf16.msra.mxu0 0
        %2217 = vmatprep.subr.bf16.mxu0 0
        %2218 = vmatpush1.bf16.msra.mxu0 0
        %2219 = vmatprep.subr.bf16.mxu0 0
        %2220 = vmatpush1.bf16.msra.mxu0 0
        %2221 = vmatprep.subr.bf16.mxu0 0
        %2222 = vmatpush1.bf16.msra.mxu0 %v2205
        %2223 = vmatprep.subr.bf16.mxu0 0
        %2224 = vmatpush2.bf16.msra.mxu0 0
        %2225 = vmatprep.subr.bf16.mxu0 0
        %2226 = vmatpush2.bf16.msra.mxu0 0
        %2227 = vmatprep.subr.bf16.mxu0 0
        %2228 = vmatpush2.bf16.msra.mxu0 0
        %2229 = vmatprep.subr.bf16.mxu0 0
        %2230 = vmatpush2.bf16.msra.mxu0 0
        %2231 = vmatprep.subr.bf16.mxu0 0
        %2232 = vmatpush2.bf16.msra.mxu0 0
        %2233 = vmatprep.subr.bf16.mxu0 0
        %2234 = vmatpush2.bf16.msra.mxu0 0
        %2235 = vmatprep.subr.bf16.mxu0 0
        %2236 = vmatpush2.bf16.msra.mxu0 0
        %2237 = vmatprep.subr.bf16.mxu0 0
        %2238 = vmatpush2.bf16.msra.mxu0 0
        %2239 = vmatprep.mubr.bf16.mxu0 0
        %2240 = vmatmul.mubr.bf16.gmra.mxu0 %v2202
        %v2241 = vpop.f32.mrf.mxu0
        %v2242 = vadd.f32 0.0, %v2241
        %v2243 = vpop.f32.mrf.mxu0
        %v2244 = vpop.f32.mrf.mxu0
        %v2245 = vpop.f32.mrf.mxu0
        %2246 = vdwg.mxu0
        %v2248 = vsel %vm1919, %v2013, 0
        %v2251 = vsel %vm2019, %v1543, 0
        %2253 = vmatprep.subr.bf16.mxu0 0
        %2254 = vmatpush1.bf16.msra.mxu0 0
        %2255 = vmatprep.subr.bf16.mxu0 0
        %2256 = vmatpush1.bf16.msra.mxu0 0
        %2257 = vmatprep.subr.bf16.mxu0 0
        %2258 = vmatpush1.bf16.msra.mxu0 0
        %2259 = vmatprep.subr.bf16.mxu0 0
        %2260 = vmatpush1.bf16.msra.mxu0 0
        %2261 = vmatprep.subr.bf16.mxu0 0
        %2262 = vmatpush1.bf16.msra.mxu0 0
        %2263 = vmatprep.subr.bf16.mxu0 0
        %2264 = vmatpush1.bf16.msra.mxu0 0
        %2265 = vmatprep.subr.bf16.mxu0 0
        %2266 = vmatpush1.bf16.msra.mxu0 0
        %2267 = vmatprep.subr.bf16.mxu0 0
        %2268 = vmatpush1.bf16.msra.mxu0 %v2251
        %2269 = vmatprep.subr.bf16.mxu0 0
        %2270 = vmatpush2.bf16.msra.mxu0 0
        %2271 = vmatprep.subr.bf16.mxu0 0
        %2272 = vmatpush2.bf16.msra.mxu0 0
        %2273 = vmatprep.subr.bf16.mxu0 0
        %2274 = vmatpush2.bf16.msra.mxu0 0
        %2275 = vmatprep.subr.bf16.mxu0 0
        %2276 = vmatpush2.bf16.msra.mxu0 0
        %2277 = vmatprep.subr.bf16.mxu0 0
        %2278 = vmatpush2.bf16.msra.mxu0 0
        %2279 = vmatprep.subr.bf16.mxu0 0
        %2280 = vmatpush2.bf16.msra.mxu0 0
        %2281 = vmatprep.subr.bf16.mxu0 0
        %2282 = vmatpush2.bf16.msra.mxu0 0
        %2283 = vmatprep.subr.bf16.mxu0 0
        %2284 = vmatpush2.bf16.msra.mxu0 0
        %2285 = vmatprep.mubr.bf16.mxu0 0
        %2286 = vmatmul.mubr.bf16.gmra.mxu0 %v2248
        %v2287 = vpop.f32.mrf.mxu0
        %v2288 = vadd.f32 0.0, %v2287
        %v2289 = vpop.f32.mrf.mxu0
        %v2290 = vpop.f32.mrf.mxu0
        %v2291 = vpop.f32.mrf.mxu0
        %2292 = vdwg.mxu0
        %v2294 = vsel %vm1919, %v2014, 0
        %v2297 = vsel %vm2019, %v1546, 0
        %2299 = vmatprep.subr.bf16.mxu0 0
        %2300 = vmatpush1.bf16.msra.mxu0 0
        %2301 = vmatprep.subr.bf16.mxu0 0
        %2302 = vmatpush1.bf16.msra.mxu0 0
        %2303 = vmatprep.subr.bf16.mxu0 0
        %2304 = vmatpush1.bf16.msra.mxu0 0
        %2305 = vmatprep.subr.bf16.mxu0 0
        %2306 = vmatpush1.bf16.msra.mxu0 0
        %2307 = vmatprep.subr.bf16.mxu0 0
        %2308 = vmatpush1.bf16.msra.mxu0 0
        %2309 = vmatprep.subr.bf16.mxu0 0
        %2310 = vmatpush1.bf16.msra.mxu0 0
        %2311 = vmatprep.subr.bf16.mxu0 0
        %2312 = vmatpush1.bf16.msra.mxu0 0
        %2313 = vmatprep.subr.bf16.mxu0 0
        %2314 = vmatpush1.bf16.msra.mxu0 %v2297
        %2315 = vmatprep.subr.bf16.mxu0 0
        %2316 = vmatpush2.bf16.msra.mxu0 0
        %2317 = vmatprep.subr.bf16.mxu0 0
        %2318 = vmatpush2.bf16.msra.mxu0 0
        %2319 = vmatprep.subr.bf16.mxu0 0
        %2320 = vmatpush2.bf16.msra.mxu0 0
        %2321 = vmatprep.subr.bf16.mxu0 0
        %2322 = vmatpush2.bf16.msra.mxu0 0
        %2323 = vmatprep.subr.bf16.mxu0 0
        %2324 = vmatpush2.bf16.msra.mxu0 0
        %2325 = vmatprep.subr.bf16.mxu0 0
        %2326 = vmatpush2.bf16.msra.mxu0 0
        %2327 = vmatprep.subr.bf16.mxu0 0
        %2328 = vmatpush2.bf16.msra.mxu0 0
        %2329 = vmatprep.subr.bf16.mxu0 0
        %2330 = vmatpush2.bf16.msra.mxu0 0
        %2331 = vmatprep.mubr.bf16.mxu0 0
        %2332 = vmatmul.mubr.bf16.gmra.mxu0 %v2294
        %v2333 = vpop.f32.mrf.mxu0
        %v2334 = vadd.f32 0.0, %v2333
        %v2335 = vpop.f32.mrf.mxu0
        %v2336 = vpop.f32.mrf.mxu0
        %v2337 = vpop.f32.mrf.mxu0
        %2338 = vdwg.mxu0
        %v2340 = vsel %vm1919, %v2015, 0
        %v2343 = vsel %vm2019, %v1549, 0
        %2345 = vmatprep.subr.bf16.mxu0 0
        %2346 = vmatpush1.bf16.msra.mxu0 0
        %2347 = vmatprep.subr.bf16.mxu0 0
        %2348 = vmatpush1.bf16.msra.mxu0 0
        %2349 = vmatprep.subr.bf16.mxu0 0
        %2350 = vmatpush1.bf16.msra.mxu0 0
        %2351 = vmatprep.subr.bf16.mxu0 0
        %2352 = vmatpush1.bf16.msra.mxu0 0
        %2353 = vmatprep.subr.bf16.mxu0 0
        %2354 = vmatpush1.bf16.msra.mxu0 0
        %2355 = vmatprep.subr.bf16.mxu0 0
        %2356 = vmatpush1.bf16.msra.mxu0 0
        %2357 = vmatprep.subr.bf16.mxu0 0
        %2358 = vmatpush1.bf16.msra.mxu0 0
        %2359 = vmatprep.subr.bf16.mxu0 0
        %2360 = vmatpush1.bf16.msra.mxu0 %v2343
        %2361 = vmatprep.subr.bf16.mxu0 0
        %2362 = vmatpush2.bf16.msra.mxu0 0
        %2363 = vmatprep.subr.bf16.mxu0 0
        %2364 = vmatpush2.bf16.msra.mxu0 0
        %2365 = vmatprep.subr.bf16.mxu0 0
        %2366 = vmatpush2.bf16.msra.mxu0 0
        %2367 = vmatprep.subr.bf16.mxu0 0
        %2368 = vmatpush2.bf16.msra.mxu0 0
        %2369 = vmatprep.subr.bf16.mxu0 0
        %2370 = vmatpush2.bf16.msra.mxu0 0
        %2371 = vmatprep.subr.bf16.mxu0 0
        %2372 = vmatpush2.bf16.msra.mxu0 0
        %2373 = vmatprep.subr.bf16.mxu0 0
        %2374 = vmatpush2.bf16.msra.mxu0 0
        %2375 = vmatprep.subr.bf16.mxu0 0
        %2376 = vmatpush2.bf16.msra.mxu0 0
        %2377 = vmatprep.mubr.bf16.mxu0 0
        %2378 = vmatmul.mubr.bf16.gmra.mxu0 %v2340
        %v2379 = vpop.f32.mrf.mxu0
        %v2380 = vadd.f32 0.0, %v2379
        %v2381 = vpop.f32.mrf.mxu0
        %v2382 = vpop.f32.mrf.mxu0
        %v2383 = vpop.f32.mrf.mxu0
        %2384 = vdwg.mxu0
        %v2385 = vcombine.low %v2058, %v2150
        %v2386 = vcombine.high %v2058, %v2150
        %v2388 = vunpack.c.l.s4 1983009808
        %v2389 = vunpack.c.0.s8 %v2388
        %v2390 = vlaneseq
        %v2391 = vshrl.u32 %v2390, 7
        %v2392 = vsub.s32 %v2389, %v2391
        %v2393 = vrot.slane %v2385, %v2392
        %v2395 = vunpack.c.l.s4 1983009808
        %v2396 = vunpack.c.0.s8 %v2395
        %v2397 = vlaneseq
        %v2398 = vshrl.u32 %v2397, 7
        %v2399 = vsub.s32 %v2396, %v2398
        %v2400 = vrot.slane %v2386, %v2399
        %v2401 = vcombine.low %v2104, %v2196
        %v2402 = vcombine.high %v2104, %v2196
        %v2404 = vunpack.c.l.s4 1983009808
        %v2405 = vunpack.c.0.s8 %v2404
        %v2406 = vlaneseq
        %v2407 = vshrl.u32 %v2406, 7
        %v2408 = vsub.s32 %v2405, %v2407
        %v2409 = vrot.slane %v2401, %v2408
        %v2411 = vunpack.c.l.s4 1983009808
        %v2412 = vunpack.c.0.s8 %v2411
        %v2413 = vlaneseq
        %v2414 = vshrl.u32 %v2413, 7
        %v2415 = vsub.s32 %v2412, %v2414
        %v2416 = vrot.slane %v2402, %v2415
        %v2417 = vcombine.low %v2393, %v2409
        %v2418 = vcombine.high %v2393, %v2409
        %v2420 = vunpack.c.l.s4 1934713408
        %v2421 = vunpack.c.0.s8 %v2420
        %v2422 = vlaneseq
        %v2423 = vshrl.u32 %v2422, 7
        %v2424 = vsub.s32 %v2421, %v2423
        %v2425 = vrot.slane %v2417, %v2424
        %v2427 = vunpack.c.l.s4 1934713408
        %v2428 = vunpack.c.0.s8 %v2427
        %v2429 = vlaneseq
        %v2430 = vshrl.u32 %v2429, 7
        %v2431 = vsub.s32 %v2428, %v2430
        %v2432 = vrot.slane %v2418, %v2431
        %v2433 = vcombine.low %v2400, %v2416
        %v2434 = vcombine.high %v2400, %v2416
        %v2436 = vunpack.c.l.s4 1934713408
        %v2437 = vunpack.c.0.s8 %v2436
        %v2438 = vlaneseq
        %v2439 = vshrl.u32 %v2438, 7
        %v2440 = vsub.s32 %v2437, %v2439
        %v2441 = vrot.slane %v2433, %v2440
        %v2443 = vunpack.c.l.s4 1934713408
        %v2444 = vunpack.c.0.s8 %v2443
        %v2445 = vlaneseq
        %v2446 = vshrl.u32 %v2445, 7
        %v2447 = vsub.s32 %v2444, %v2446
        %v2448 = vrot.slane %v2434, %v2447
        %v2449 = vcombine.high %v2425, 0.0
        %v2450 = vcombine.high %v2432, 0.0
        %v2451 = vcombine.high %v2441, 0.0
        %v2452 = vcombine.high %v2448, 0.0
        %v2453 = vcombine.low %v2242, %v2334
        %v2454 = vcombine.high %v2242, %v2334
        %v2456 = vunpack.c.l.s4 1983009808
        %v2457 = vunpack.c.0.s8 %v2456
        %v2458 = vlaneseq
        %v2459 = vshrl.u32 %v2458, 7
        %v2460 = vsub.s32 %v2457, %v2459
        %v2461 = vrot.slane %v2453, %v2460
        %v2463 = vunpack.c.l.s4 1983009808
        %v2464 = vunpack.c.0.s8 %v2463
        %v2465 = vlaneseq
        %v2466 = vshrl.u32 %v2465, 7
        %v2467 = vsub.s32 %v2464, %v2466
        %v2468 = vrot.slane %v2454, %v2467
        %v2469 = vcombine.low %v2288, %v2380
        %v2470 = vcombine.high %v2288, %v2380
        %v2472 = vunpack.c.l.s4 1983009808
        %v2473 = vunpack.c.0.s8 %v2472
        %v2474 = vlaneseq
        %v2475 = vshrl.u32 %v2474, 7
        %v2476 = vsub.s32 %v2473, %v2475
        %v2477 = vrot.slane %v2469, %v2476
        %v2479 = vunpack.c.l.s4 1983009808
        %v2480 = vunpack.c.0.s8 %v2479
        %v2481 = vlaneseq
        %v2482 = vshrl.u32 %v2481, 7
        %v2483 = vsub.s32 %v2480, %v2482
        %v2484 = vrot.slane %v2470, %v2483
        %v2485 = vcombine.low %v2461, %v2477
        %v2486 = vcombine.high %v2461, %v2477
        %v2488 = vunpack.c.l.s4 1934713408
        %v2489 = vunpack.c.0.s8 %v2488
        %v2490 = vlaneseq
        %v2491 = vshrl.u32 %v2490, 7
        %v2492 = vsub.s32 %v2489, %v2491
        %v2493 = vrot.slane %v2485, %v2492
        %v2495 = vunpack.c.l.s4 1934713408
        %v2496 = vunpack.c.0.s8 %v2495
        %v2497 = vlaneseq
        %v2498 = vshrl.u32 %v2497, 7
        %v2499 = vsub.s32 %v2496, %v2498
        %v2500 = vrot.slane %v2486, %v2499
        %v2501 = vcombine.low %v2468, %v2484
        %v2502 = vcombine.high %v2468, %v2484
        %v2504 = vunpack.c.l.s4 1934713408
        %v2505 = vunpack.c.0.s8 %v2504
        %v2506 = vlaneseq
        %v2507 = vshrl.u32 %v2506, 7
        %v2508 = vsub.s32 %v2505, %v2507
        %v2509 = vrot.slane %v2501, %v2508
        %v2511 = vunpack.c.l.s4 1934713408
        %v2512 = vunpack.c.0.s8 %v2511
        %v2513 = vlaneseq
        %v2514 = vshrl.u32 %v2513, 7
        %v2515 = vsub.s32 %v2512, %v2514
        %v2516 = vrot.slane %v2502, %v2515
        %v2517 = vcombine.high %v2493, 0.0
        %v2518 = vcombine.high %v2500, 0.0
        %v2519 = vcombine.high %v2509, 0.0
        %v2520 = vcombine.high %v2516, 0.0
        %v2521 = vcombine.low %v2425, %v2432
        %v2523 = vunpack.c.l.s4 1983009808
        %v2524 = vunpack.c.0.s8 %v2523
        %v2525 = vlaneseq
        %v2526 = vshrl.u32 %v2525, 7
        %v2527 = vsub.s32 %v2524, %v2526
        %v2528 = vrot.slane %v2521, %v2527
        %v2529 = vcombine.low %v2449, %v2450
        %v2531 = vunpack.c.l.s4 1983009808
        %v2532 = vunpack.c.0.s8 %v2531
        %v2533 = vlaneseq
        %v2534 = vshrl.u32 %v2533, 7
        %v2535 = vsub.s32 %v2532, %v2534
        %v2536 = vrot.slane %v2529, %v2535
        %v2537 = vcombine.low %v2441, %v2448
        %v2539 = vunpack.c.l.s4 1983009808
        %v2540 = vunpack.c.0.s8 %v2539
        %v2541 = vlaneseq
        %v2542 = vshrl.u32 %v2541, 7
        %v2543 = vsub.s32 %v2540, %v2542
        %v2544 = vrot.slane %v2537, %v2543
        %v2545 = vcombine.low %v2451, %v2452
        %v2547 = vunpack.c.l.s4 1983009808
        %v2548 = vunpack.c.0.s8 %v2547
        %v2549 = vlaneseq
        %v2550 = vshrl.u32 %v2549, 7
        %v2551 = vsub.s32 %v2548, %v2550
        %v2552 = vrot.slane %v2545, %v2551
        %v2553 = vcombine.low %v2528, %v2536
        %v2554 = vcombine.high %v2528, %v2536
        %v2556 = vunpack.c.l.s4 1934713408
        %v2557 = vunpack.c.0.s8 %v2556
        %v2558 = vlaneseq
        %v2559 = vshrl.u32 %v2558, 7
        %v2560 = vsub.s32 %v2557, %v2559
        %v2561 = vrot.slane %v2553, %v2560
        %v2563 = vunpack.c.l.s4 1934713408
        %v2564 = vunpack.c.0.s8 %v2563
        %v2565 = vlaneseq
        %v2566 = vshrl.u32 %v2565, 7
        %v2567 = vsub.s32 %v2564, %v2566
        %v2568 = vrot.slane %v2554, %v2567
        %v2569 = vcombine.low %v2544, %v2552
        %v2570 = vcombine.high %v2544, %v2552
        %v2572 = vunpack.c.l.s4 1934713408
        %v2573 = vunpack.c.0.s8 %v2572
        %v2574 = vlaneseq
        %v2575 = vshrl.u32 %v2574, 7
        %v2576 = vsub.s32 %v2573, %v2575
        %v2577 = vrot.slane %v2569, %v2576
        %v2579 = vunpack.c.l.s4 1934713408
        %v2580 = vunpack.c.0.s8 %v2579
        %v2581 = vlaneseq
        %v2582 = vshrl.u32 %v2581, 7
        %v2583 = vsub.s32 %v2580, %v2582
        %v2584 = vrot.slane %v2570, %v2583
        %v2585 = vcombine.low %v2561, %v2577
        %v2586 = vcombine.high %v2561, %v2577
        %v2587 = vcombine.low %v2568, %v2584
        %v2588 = vcombine.high %v2568, %v2584
        %v2589 = vcombine.low %v2493, %v2500
        %v2591 = vunpack.c.l.s4 1983009808
        %v2592 = vunpack.c.0.s8 %v2591
        %v2593 = vlaneseq
        %v2594 = vshrl.u32 %v2593, 7
        %v2595 = vsub.s32 %v2592, %v2594
        %v2596 = vrot.slane %v2589, %v2595
        %v2597 = vcombine.low %v2517, %v2518
        %v2599 = vunpack.c.l.s4 1983009808
        %v2600 = vunpack.c.0.s8 %v2599
        %v2601 = vlaneseq
        %v2602 = vshrl.u32 %v2601, 7
        %v2603 = vsub.s32 %v2600, %v2602
        %v2604 = vrot.slane %v2597, %v2603
        %v2605 = vcombine.low %v2509, %v2516
        %v2607 = vunpack.c.l.s4 1983009808
        %v2608 = vunpack.c.0.s8 %v2607
        %v2609 = vlaneseq
        %v2610 = vshrl.u32 %v2609, 7
        %v2611 = vsub.s32 %v2608, %v2610
        %v2612 = vrot.slane %v2605, %v2611
        %v2613 = vcombine.low %v2519, %v2520
        %v2615 = vunpack.c.l.s4 1983009808
        %v2616 = vunpack.c.0.s8 %v2615
        %v2617 = vlaneseq
        %v2618 = vshrl.u32 %v2617, 7
        %v2619 = vsub.s32 %v2616, %v2618
        %v2620 = vrot.slane %v2613, %v2619
        %v2621 = vcombine.low %v2596, %v2604
        %v2622 = vcombine.high %v2596, %v2604
        %v2624 = vunpack.c.l.s4 1934713408
        %v2625 = vunpack.c.0.s8 %v2624
        %v2626 = vlaneseq
        %v2627 = vshrl.u32 %v2626, 7
        %v2628 = vsub.s32 %v2625, %v2627
        %v2629 = vrot.slane %v2621, %v2628
        %v2631 = vunpack.c.l.s4 1934713408
        %v2632 = vunpack.c.0.s8 %v2631
        %v2633 = vlaneseq
        %v2634 = vshrl.u32 %v2633, 7
        %v2635 = vsub.s32 %v2632, %v2634
        %v2636 = vrot.slane %v2622, %v2635
        %v2637 = vcombine.low %v2612, %v2620
        %v2638 = vcombine.high %v2612, %v2620
        %v2640 = vunpack.c.l.s4 1934713408
        %v2641 = vunpack.c.0.s8 %v2640
        %v2642 = vlaneseq
        %v2643 = vshrl.u32 %v2642, 7
        %v2644 = vsub.s32 %v2641, %v2643
        %v2645 = vrot.slane %v2637, %v2644
        %v2647 = vunpack.c.l.s4 1934713408
        %v2648 = vunpack.c.0.s8 %v2647
        %v2649 = vlaneseq
        %v2650 = vshrl.u32 %v2649, 7
        %v2651 = vsub.s32 %v2648, %v2650
        %v2652 = vrot.slane %v2638, %v2651
        %v2653 = vcombine.low %v2629, %v2645
        %v2654 = vcombine.high %v2629, %v2645
        %v2655 = vcombine.low %v2636, %v2652
        %v2656 = vcombine.high %v2636, %v2652
        %2659 = vrot.lane.b32.xlu0 %v2586, 32
        %v2660 = vpop.permute.xlu0 %2659
        %2661 = vrot.lane.b32.xlu0 %v2654, 32
        %v2662 = vpop.permute.xlu0 %2661
        %2667 = vrot.lane.b32.xlu0 %v2587, 64
        %v2668 = vpop.permute.xlu0 %2667
        %2669 = vrot.lane.b32.xlu0 %v2655, 64
        %v2670 = vpop.permute.xlu0 %2669
        %2675 = vrot.lane.b32.xlu0 %v2588, 96
        %v2676 = vpop.permute.xlu0 %2675
        %2677 = vrot.lane.b32.xlu0 %v2656, 96
        %v2678 = vpop.permute.xlu0 %2677
        %v2681 = vsel %vm1550, %v2585, %v2660
        %v2682 = vsel %vm1550, %v2653, %v2662
        %vm2683 = vcmask 523264
        %v2684 = vsel %vm2683, %v2681, %v2668
        %v2685 = vsel %vm2683, %v2682, %v2670
        %vm2686 = vcmask 785408
        %v2687 = vsel %vm2686, %v2684, %v2676
        %v2688 = vsel %vm2686, %v2685, %v2678
        %v2689 = vpack.c.bf16 %v2688, %v2687
        %v2690 = vld [vmem:[%s342] sm:$0xf]
        %v2691 = vld [vmem:[%s342 + $0x4] sm:$0xf]
        %v2692 = vld [vmem:[%s342 + $0x8] sm:$0xf]
        %v2693 = vld [vmem:[%s342 + $0xc] sm:$0xf]
        %v2694 = vld [vmem:[%s342 + $0x10] sm:$0xf]
        %v2695 = vld [vmem:[%s342 + $0x14] sm:$0xf]
        %v2696 = vld [vmem:[%s342 + $0x18] sm:$0xf]
        %v2697 = vld [vmem:[%s342 + $0x1c] sm:$0xf]
        %v2698 = vld [vmem:[%s342 + $0x20] sm:$0xf]
        %v2699 = vld [vmem:[%s342 + $0x24] sm:$0xf]
        %v2700 = vld [vmem:[%s342 + $0x28] sm:$0xf]
        %v2701 = vld [vmem:[%s342 + $0x2c] sm:$0xf]
        %v2702 = vld [vmem:[%s342 + $0x30] sm:$0xf]
        %v2703 = vld [vmem:[%s342 + $0x34] sm:$0xf]
        %v2704 = vld [vmem:[%s342 + $0x38] sm:$0xf]
        %v2705 = vld [vmem:[%s342 + $0x3c] sm:$0xf]
        %v2706 = vld [vmem:[%s390] sm:$0x1]
        %v2708 = vlaneseq
        %v2709 = vshrl.u32 %v2708, 7
        %v2710 = vsub.s32 0, %v2709
        %v2711 = vrot.slane %v2706, %v2710
        %v2729 = vunpack.c.l.b16 %v2690
        %v2730 = vunpack.c.l.b16 %v2691
        %v2731 = vunpack.c.l.b16 %v2692
        %v2732 = vunpack.c.l.b16 %v2693
        %v2733 = vunpack.c.l.b16 %v2694
        %v2734 = vunpack.c.l.b16 %v2695
        %v2735 = vunpack.c.l.b16 %v2696
        %v2736 = vunpack.c.l.b16 %v2697
        %v2737 = vunpack.c.l.b16 %v2698
        %v2738 = vunpack.c.l.b16 %v2699
        %v2739 = vunpack.c.l.b16 %v2700
        %v2740 = vunpack.c.l.b16 %v2701
        %v2741 = vunpack.c.l.b16 %v2702
        %v2742 = vunpack.c.l.b16 %v2703
        %v2743 = vunpack.c.l.b16 %v2704
        %v2744 = vunpack.c.l.b16 %v2705
        %v2745 = vpack.c.b16 %v2730, %v2729
        %v2746 = vpack.c.b16 %v2732, %v2731
        %v2747 = vpack.c.b16 %v2734, %v2733
        %v2748 = vpack.c.b16 %v2736, %v2735
        %v2749 = vpack.c.b16 %v2738, %v2737
        %v2750 = vpack.c.b16 %v2740, %v2739
        %v2751 = vpack.c.b16 %v2742, %v2741
        %v2752 = vpack.c.b16 %v2744, %v2743
        %2761 = vmatprep.subr.bf16.mxu0 0
        %2762 = vmatpush1.bf16.msra.mxu0 %v2752
        %2763 = vmatprep.subr.bf16.mxu0 0
        %2764 = vmatpush1.bf16.msra.mxu0 %v2751
        %2765 = vmatprep.subr.bf16.mxu0 0
        %2766 = vmatpush1.bf16.msra.mxu0 %v2750
        %2767 = vmatprep.subr.bf16.mxu0 0
        %2768 = vmatpush1.bf16.msra.mxu0 %v2749
        %2769 = vmatprep.subr.bf16.mxu0 0
        %2770 = vmatpush1.bf16.msra.mxu0 %v2748
        %2771 = vmatprep.subr.bf16.mxu0 0
        %2772 = vmatpush1.bf16.msra.mxu0 %v2747
        %2773 = vmatprep.subr.bf16.mxu0 0
        %2774 = vmatpush1.bf16.msra.mxu0 %v2746
        %2775 = vmatprep.subr.bf16.mxu0 0
        %2776 = vmatpush1.bf16.msra.mxu0 %v2745
        %2777 = vmatprep.subr.bf16.mxu0 0
        %2778 = vmatpush2.bf16.msra.mxu0 0
        %2779 = vmatprep.subr.bf16.mxu0 0
        %2780 = vmatpush2.bf16.msra.mxu0 0
        %2781 = vmatprep.subr.bf16.mxu0 0
        %2782 = vmatpush2.bf16.msra.mxu0 0
        %2783 = vmatprep.subr.bf16.mxu0 0
        %2784 = vmatpush2.bf16.msra.mxu0 0
        %2785 = vmatprep.subr.bf16.mxu0 0
        %2786 = vmatpush2.bf16.msra.mxu0 0
        %2787 = vmatprep.subr.bf16.mxu0 0
        %2788 = vmatpush2.bf16.msra.mxu0 0
        %2789 = vmatprep.subr.bf16.mxu0 0
        %2790 = vmatpush2.bf16.msra.mxu0 0
        %2791 = vmatprep.subr.bf16.mxu0 0
        %2792 = vmatpush2.bf16.msra.mxu0 0
        %2793 = vmatprep.mubr.bf16.mxu0 0
        %2794 = vmatmul.mubr.bf16.gmra.mxu0 %v2689
        %v2795 = vpop.f32.mrf.mxu0
        %v2796 = vadd.f32 %v2711, %v2795
        %v2797 = vpop.f32.mrf.mxu0
        %v2798 = vpop.f32.mrf.mxu0
        %v2799 = vadd.f32 %v2711, %v2798
        %v2800 = vpop.f32.mrf.mxu0
        %2801 = vdwg.mxu0
        %2802 = vst [vmem:[%s386] sm:$0xff] %v2796
        %2803 = vst [vmem:[%s386 + $0x8] sm:$0xff] %v2799
        %s2804 = sand.u32 %s182, 1
        %s2805 = scalar_lea.sflag [#allocation4], %s2804
        %s2806 = sand.u32 %s182, 1
        %s2807 = smul.addr %s2806, 16
        %s2808 = scalar_lea.vmem [#allocation10], %s2807
        // Predicated region
        $region57: #{tpu_custom_call.1} parent=39 // pred_check
          %p2809 = pneg %p192
        $region58: #{tpu_custom_call.1} parent=39 // pred_check_branch
          %2811 = sbr.rel (%p2809) target = $region60
        $region59: #{tpu_custom_call.1} parent=39 // pred_region
          %s2812 = smul.u32 2, %s33
          %s2814 = ssub.s32 256, 256
          %2815 = vsyncadd %s2805, %s2814
          %s2816 = smul.addr %s32, 2
          %s2817 = sadd.s32 %s2812, %s2816
          %s2818 = smul.addr %s2817, 128
          %s2819 = scalar_lea.hbm %s5, %s2818
          %s2820 = sshll.u32 %s2808, 4
          %s2821 = int_to_ptr.vmem [resolvable:$true] %s2820
          %2826 = dma.vmem_to_hbm [thread:$0]  %s2821, 256, %s2819, %s2805, 128, 128, 8
        $region60: #{tpu_custom_call.1} parent=39 // pred_fallthru
          _
      $region40: #{tpu_custom_call.1} parent=5 // pred_fallthru
        _
      %p2827 = scmp.le.s32.totalorder 2, %s23
      // Predicated region
      $region61: #{tpu_custom_call.1} parent=5 // pred_check
        %p2828 = pneg %p2827
      $region62: #{tpu_custom_call.1} parent=5 // pred_check_branch
        %2830 = sbr.rel (%p2828) target = $region64
      $region63: #{tpu_custom_call.1} parent=5 // pred_region
        %s2831 = ssub.s32 %s23, 2
        // Predicated region
        $region65: #{tpu_custom_call.1} parent=63 // pred_check
          %p2832 = pneg %p198
        $region66: #{tpu_custom_call.1} parent=63 // pred_check_branch
          %2834 = sbr.rel (%p2832) target = $region68
        $region67: #{tpu_custom_call.1} parent=63 // pred_region
          %s2835 = sand.u32 %s183, 1
          %s2836 = scalar_lea.sflag [#allocation4], %s2835
          %s2837 = sand.u32 %s183, 1
          %s2838 = smul.addr %s2837, 16
          %s2839 = scalar_lea.vmem [#allocation10], %s2838
          %2840 = dma.done %s2836, 256
        $region68: #{tpu_custom_call.1} parent=63 // pred_fallthru
          _
      $region64: #{tpu_custom_call.1} parent=5 // pred_fallthru
        _
    $region6: #{tpu_custom_call.1} parent=1 // loop_footer
      %s27 = sadd.s32 1, %s23
    $region7: #{tpu_custom_call.1} parent=1 // loop_footer_branch
      %22 = sbr.rel target = $region3
    $region8: #{tpu_custom_call.1} parent=1 // loop_exit
      _
    %2841 = vsyncpa [#allocation3], 1
    %s2842 = scalar_lea.sflag [#allocation3], 1
    %2843 = vsyncpa %s2842, 1
    %2844 = vsyncpa [#allocation6], 1
    %s2845 = scalar_lea.sflag [#allocation6], 1
    %2846 = vsyncpa %s2845, 1
    %2847 = vsyncpa [#allocation9], 1
    %s2848 = scalar_lea.sflag [#allocation9], 1
    %2849 = vsyncpa %s2848, 1
    %2850 = vsyncpa [#allocation4], 1
    %s2851 = scalar_lea.sflag [#allocation4], 1
    %2852 = vsyncpa %s2851, 1

</llo_original>
